<compile_context>
chip_gen: v5e
topology: v5e:2x2
jax: 0.10.0
libtpu: 0.0.40
codegen_flags: <defaults>
</compile_context>

<pallas_src>
import math

import jax
import jax.numpy as jnp
from jax.experimental import pallas as pl
from jax.experimental.pallas import tpu as pltpu

# ---------------- model configuration (small synthetic ViT) ----------------
BATCH = 2
IN_CH = 3
IMG = 16
PATCH = 8
EMBED = 32
DEPTH = 2
HEADS = 2
HEAD_DIM = EMBED // HEADS
MLP_HIDDEN = EMBED * 4
RANK = 4            # LoRA rank r
NUM_CLASSES = 10
PAD_CLASSES = 128   # lane-dense padded head width (sliced back in wrapper)
LN_EPS = 1e-6

N_PATCH = (IMG // PATCH) ** 2      # 4
N_TOK = N_PATCH + 1                # 5 (cls token + patches)
PATCH_K = IN_CH * PATCH * PATCH    # 192
ATTN_SCALE = 1.0 / math.sqrt(HEAD_DIM)


# ------------------------------ fused kernel --------------------------------
def _layernorm(x, g, b):
    mean = jnp.mean(x, axis=-1, keepdims=True)
    xc = x - mean
    var = jnp.mean(xc * xc, axis=-1, keepdims=True)
    return xc * jax.lax.rsqrt(var + LN_EPS) * g + b


def _fused_vit_kernel(patches_ref, pw_ref, pb_ref, cls_ref, pos_ref,
                      g1_ref, b1_ref, wqkv_ref, bqkv_ref,
                      wproj_ref, bproj_ref, g2_ref, b2_ref,
                      wfc1_ref, bfc1_ref, wfc2_ref, bfc2_ref,
                      ng_ref, nb_ref, hw_ref, hb_ref, out_ref):
    # ---- patch embedding for this batch element (conv == unfold + matmul) ----
    tok = jnp.dot(patches_ref[0], pw_ref[...],
                  preferred_element_type=jnp.float32) + pb_ref[...]      # (Np, D)
    # tokens: [cls + pos[0]] ++ [patch tokens + pos[1:]]
    x = jnp.concatenate([cls_ref[...], tok + pos_ref[...]], axis=0)      # (N, D)

    for d in range(DEPTH):                      # static unroll over depth
        # ---- attention branch (pre-norm) ----
        h = _layernorm(x, g1_ref[d], b1_ref[d])
        # LoRA q/v deltas are pre-folded into wqkv (rank-4 B@A added in wrapper)
        qkv = jnp.dot(h, wqkv_ref[d],
                      preferred_element_type=jnp.float32) + bqkv_ref[d]  # (N, 3D)
        head_outs = []
        for hh in range(HEADS):                 # all heads inside one grid step
            c0 = hh * HEAD_DIM
            q = qkv[:, c0:c0 + HEAD_DIM] * ATTN_SCALE
            k = qkv[:, EMBED + c0:EMBED + c0 + HEAD_DIM]
            v = qkv[:, 2 * EMBED + c0:2 * EMBED + c0 + HEAD_DIM]
            s = jnp.dot(q, k.T, preferred_element_type=jnp.float32)      # (N, N)
            s = s - jnp.max(s, axis=-1, keepdims=True)
            p = jnp.exp(s)
            p = p * pl.reciprocal(jnp.sum(p, axis=-1, keepdims=True),
                                  approx=True)
            head_outs.append(jnp.dot(p, v, preferred_element_type=jnp.float32))
        attn = jnp.concatenate(head_outs, axis=-1)                       # (N, D)
        x = x + jnp.dot(attn, wproj_ref[d],
                        preferred_element_type=jnp.float32) + bproj_ref[d]

        # ---- MLP branch (pre-norm) ----
        h = _layernorm(x, g2_ref[d], b2_ref[d])
        h = jnp.dot(h, wfc1_ref[d],
                    preferred_element_type=jnp.float32) + bfc1_ref[d]
        # TODO(synk): timm uses exact (erf) GELU; tanh approximation used here
        # for guaranteed Mosaic transcendental support (tiny numeric deviation).
        h = jax.nn.gelu(h, approximate=True)
        x = x + jnp.dot(h, wfc2_ref[d],
                        preferred_element_type=jnp.float32) + bfc2_ref[d]

    # ---- final norm (per-row, so only the pooled cls row is needed) ----
    cls_tok = _layernorm(x[0:1, :], ng_ref[...], nb_ref[...])            # (1, D)
    # lane-dense (1, 128) head matmul; real logits occupy the first NUM_CLASSES
    out_ref[0] = jnp.dot(cls_tok, hw_ref[...],
                         preferred_element_type=jnp.float32) + hb_ref[...]


# ------------------------------ wrapper --------------------------------------
def _prepare_inputs(x_nchw, params):
    """Layout glue (constant-folded by XLA under jit): patch unfold, weight
    pre-transposition, LoRA fold into W_qkv, head padding to 128 lanes."""
    B = x_nchw.shape[0]
    gh = gw = IMG // PATCH
    p = x_nchw.reshape(B, IN_CH, gh, PATCH, gw, PATCH)
    # per-patch ordering (C, ph, pw) matches conv weight (Cout, Cin, kh, kw) flatten
    patches = p.transpose(0, 2, 4, 1, 3, 5).reshape(B, gh * gw, PATCH_K)

    pw = params["patch_w"].reshape(EMBED, PATCH_K).T                     # (K, D)
    pb = params["patch_b"].reshape(1, EMBED)
    cls_pos0 = params["cls_token"].reshape(1, EMBED) + params["pos_embed"][0, 0:1]
    pos_rest = params["pos_embed"][0, 1:]                                # (Np, D)

    def fold_qkv(blk):
        # PyTorch: qkv[:, :D] += x @ A_q.T @ B_q.T ; qkv[:, -D:] += x @ A_v.T @ B_v.T
        # Transposed layout (D, 3D): add A.T @ B.T into the q / v column blocks.
        w_t = blk["w_qkv"].T
        w_t = w_t.at[:, :EMBED].add(blk["lora_q_A"].T @ blk["lora_q_B"].T)
        w_t = w_t.at[:, 2 * EMBED:].add(blk["lora_v_A"].T @ blk["lora_v_B"].T)
        return w_t

    blocks = params["blocks"]
    stack = lambda f: jnp.stack([f(b) for b in blocks], axis=0)
    g1 = stack(lambda b: b["norm1_g"].reshape(1, EMBED))
    b1 = stack(lambda b: b["norm1_b"].reshape(1, EMBED))
    wqkv = stack(fold_qkv)                                               # (L, D, 3D)
    bqkv = stack(lambda b: b["b_qkv"].reshape(1, 3 * EMBED))
    wproj = stack(lambda b: b["w_proj"].T)                               # (L, D, D)
    bproj = stack(lambda b: b["b_proj"].reshape(1, EMBED))
    g2 = stack(lambda b: b["norm2_g"].reshape(1, EMBED))
    b2 = stack(lambda b: b["norm2_b"].reshape(1, EMBED))
    wfc1 = stack(lambda b: b["w_fc1"].T)                                 # (L, D, H)
    bfc1 = stack(lambda b: b["b_fc1"].reshape(1, MLP_HIDDEN))
    wfc2 = stack(lambda b: b["w_fc2"].T)                                 # (L, H, D)
    bfc2 = stack(lambda b: b["b_fc2"].reshape(1, EMBED))

    ng = params["norm_g"].reshape(1, EMBED)
    nb = params["norm_b"].reshape(1, EMBED)
    hw = jnp.zeros((EMBED, PAD_CLASSES), jnp.float32).at[:, :NUM_CLASSES].set(
        params["head_w"].T)
    hb = jnp.zeros((1, PAD_CLASSES), jnp.float32).at[:, :NUM_CLASSES].set(
        params["head_b"].reshape(1, NUM_CLASSES))

    return (patches, pw, pb, cls_pos0, pos_rest,
            g1, b1, wqkv, bqkv, wproj, bproj, g2, b2,
            wfc1, bfc1, wfc2, bfc2, ng, nb, hw, hb)


def lora_vit_forward(x_nchw, params):
    inputs = _prepare_inputs(x_nchw, params)
    B = x_nchw.shape[0]

    def resident(arr):
        nd = arr.ndim
        return pl.BlockSpec(arr.shape, lambda b, nd=nd: (0,) * nd)

    patches_spec = pl.BlockSpec((1, N_PATCH, PATCH_K), lambda b: (b, 0, 0))
    in_specs = [patches_spec] + [resident(a) for a in inputs[1:]]

    out = pl.pallas_call(
        _fused_vit_kernel,
        out_shape=jax.ShapeDtypeStruct((B, 1, PAD_CLASSES), jnp.float32),
        grid=(B,),
        in_specs=in_specs,
        out_specs=pl.BlockSpec((1, 1, PAD_CLASSES), lambda b: (b, 0, 0)),
        compiler_params=pltpu.CompilerParams(
            dimension_semantics=("parallel",)),
    )(*inputs)
    return out.reshape(B, PAD_CLASSES)[:, :NUM_CLASSES]


# ------------------------------ parameter init ------------------------------
def init_params(key):
    keys = jax.random.split(key, 5 + DEPTH)

    def rnd(k, shape, scale=0.02):
        return scale * jax.random.normal(k, shape, dtype=jnp.float32)

    params = {
        "patch_w": rnd(keys[0], (EMBED, IN_CH, PATCH, PATCH)),
        "patch_b": rnd(keys[1], (EMBED,)),
        "cls_token": rnd(keys[2], (1, 1, EMBED)),
        "pos_embed": rnd(keys[3], (1, N_TOK, EMBED)),
        "norm_g": jnp.ones((EMBED,), jnp.float32),
        "norm_b": jnp.zeros((EMBED,), jnp.float32),
        "head_w": rnd(keys[4], (NUM_CLASSES, EMBED)),
        "head_b": jnp.zeros((NUM_CLASSES,), jnp.float32),
    }
    blocks = []
    for d in range(DEPTH):
        bk = jax.random.split(keys[5 + d], 12)
        blocks.append({
            "norm1_g": jnp.ones((EMBED,), jnp.float32),
            "norm1_b": jnp.zeros((EMBED,), jnp.float32),
            "w_qkv": rnd(bk[0], (3 * EMBED, EMBED)),
            "b_qkv": rnd(bk[1], (3 * EMBED,)),
            # PyTorch init sets lora_B = 0 (LoRA branch numerically a no-op);
            # use nonzero deterministic values so the LoRA path is exercised —
            # the forward-pass semantics are identical.
            "lora_q_A": rnd(bk[2], (RANK, EMBED), 0.1),
            "lora_q_B": rnd(bk[3], (EMBED, RANK), 0.1),
            "lora_v_A": rnd(bk[4], (RANK, EMBED), 0.1),
            "lora_v_B": rnd(bk[5], (EMBED, RANK), 0.1),
            "w_proj": rnd(bk[6], (EMBED, EMBED)),
            "b_proj": rnd(bk[7], (EMBED,)),
            "norm2_g": jnp.ones((EMBED,), jnp.float32),
            "norm2_b": jnp.zeros((EMBED,), jnp.float32),
            "w_fc1": rnd(bk[8], (MLP_HIDDEN, EMBED)),
            "b_fc1": rnd(bk[9], (MLP_HIDDEN,)),
            "w_fc2": rnd(bk[10], (EMBED, MLP_HIDDEN)),
            "b_fc2": rnd(bk[11], (EMBED,)),
        })
    params["blocks"] = blocks
    return params


# ----------------------------------- main -----------------------------------
if __name__ == "__main__":
    key = jax.random.PRNGKey(0)
    pkey, xkey = jax.random.split(key)
    params = init_params(pkey)
    x = jax.random.normal(xkey, (BATCH, IN_CH, IMG, IMG), dtype=jnp.float32)

    logits = jax.jit(lora_vit_forward)(x, params)
    logits = jax.block_until_ready(logits)
    assert logits.shape == (BATCH, NUM_CLASSES)
    assert bool(jnp.all(jnp.isfinite(logits)))
    print("KERNEL_OK")
</pallas_src>

<mosaic_0001>
module attributes {stable_mosaic.version = 11 : i64} {
  func.func @_fused_vit_kernel(%arg0: i32, %arg1: memref<1x4x192xf32, #tpu.memory_space<vmem>>, %arg2: memref<192x32xf32, #tpu.memory_space<vmem>>, %arg3: memref<1x32xf32, #tpu.memory_space<vmem>>, %arg4: memref<1x32xf32, #tpu.memory_space<vmem>>, %arg5: memref<4x32xf32, #tpu.memory_space<vmem>>, %arg6: memref<2x1x32xf32, #tpu.memory_space<vmem>>, %arg7: memref<2x1x32xf32, #tpu.memory_space<vmem>>, %arg8: memref<2x32x96xf32, #tpu.memory_space<vmem>>, %arg9: memref<2x1x96xf32, #tpu.memory_space<vmem>>, %arg10: memref<2x32x32xf32, #tpu.memory_space<vmem>>, %arg11: memref<2x1x32xf32, #tpu.memory_space<vmem>>, %arg12: memref<2x1x32xf32, #tpu.memory_space<vmem>>, %arg13: memref<2x1x32xf32, #tpu.memory_space<vmem>>, %arg14: memref<2x32x128xf32, #tpu.memory_space<vmem>>, %arg15: memref<2x1x128xf32, #tpu.memory_space<vmem>>, %arg16: memref<2x128x32xf32, #tpu.memory_space<vmem>>, %arg17: memref<2x1x32xf32, #tpu.memory_space<vmem>>, %arg18: memref<1x32xf32, #tpu.memory_space<vmem>>, %arg19: memref<1x32xf32, #tpu.memory_space<vmem>>, %arg20: memref<32x128xf32, #tpu.memory_space<vmem>>, %arg21: memref<1x128xf32, #tpu.memory_space<vmem>>, %arg22: memref<1x1x128xf32, #tpu.memory_space<vmem>>) attributes {dimension_semantics = [#tpu.dimension_semantics<parallel>], iteration_bounds = array<i64: 2>, scalar_prefetch = 0 : i64, scratch_operands = 0 : i64, tpu.core_type = #tpu.core_type<tc>, window_params = [{transform_indices = @transform_0, window_bounds = array<i64: 1, 4, 192>}, {pipeline_mode = #tpu.pipeline_mode<synchronous>, transform_indices = @transform_1, window_bounds = array<i64: 192, 32>}, {pipeline_mode = #tpu.pipeline_mode<synchronous>, transform_indices = @transform_2, window_bounds = array<i64: 1, 32>}, {pipeline_mode = #tpu.pipeline_mode<synchronous>, transform_indices = @transform_3, window_bounds = array<i64: 1, 32>}, {pipeline_mode = #tpu.pipeline_mode<synchronous>, transform_indices = @transform_4, window_bounds = array<i64: 4, 32>}, {pipeline_mode = #tpu.pipeline_mode<synchronous>, transform_indices = @transform_5, window_bounds = array<i64: 2, 1, 32>}, {pipeline_mode = #tpu.pipeline_mode<synchronous>, transform_indices = @transform_6, window_bounds = array<i64: 2, 1, 32>}, {pipeline_mode = #tpu.pipeline_mode<synchronous>, transform_indices = @transform_7, window_bounds = array<i64: 2, 32, 96>}, {pipeline_mode = #tpu.pipeline_mode<synchronous>, transform_indices = @transform_8, window_bounds = array<i64: 2, 1, 96>}, {pipeline_mode = #tpu.pipeline_mode<synchronous>, transform_indices = @transform_9, window_bounds = array<i64: 2, 32, 32>}, {pipeline_mode = #tpu.pipeline_mode<synchronous>, transform_indices = @transform_10, window_bounds = array<i64: 2, 1, 32>}, {pipeline_mode = #tpu.pipeline_mode<synchronous>, transform_indices = @transform_11, window_bounds = array<i64: 2, 1, 32>}, {pipeline_mode = #tpu.pipeline_mode<synchronous>, transform_indices = @transform_12, window_bounds = array<i64: 2, 1, 32>}, {pipeline_mode = #tpu.pipeline_mode<synchronous>, transform_indices = @transform_13, window_bounds = array<i64: 2, 32, 128>}, {pipeline_mode = #tpu.pipeline_mode<synchronous>, transform_indices = @transform_14, window_bounds = array<i64: 2, 1, 128>}, {pipeline_mode = #tpu.pipeline_mode<synchronous>, transform_indices = @transform_15, window_bounds = array<i64: 2, 128, 32>}, {pipeline_mode = #tpu.pipeline_mode<synchronous>, transform_indices = @transform_16, window_bounds = array<i64: 2, 1, 32>}, {pipeline_mode = #tpu.pipeline_mode<synchronous>, transform_indices = @transform_17, window_bounds = array<i64: 1, 32>}, {pipeline_mode = #tpu.pipeline_mode<synchronous>, transform_indices = @transform_18, window_bounds = array<i64: 1, 32>}, {pipeline_mode = #tpu.pipeline_mode<synchronous>, transform_indices = @transform_19, window_bounds = array<i64: 32, 128>}, {pipeline_mode = #tpu.pipeline_mode<synchronous>, transform_indices = @transform_20, window_bounds = array<i64: 1, 128>}, {transform_indices = @transform_21, window_bounds = array<i64: 1, 1, 128>}]} {
    %c0 = arith.constant 0 : index
    %c0_0 = arith.constant 0 : index
    %c0_1 = arith.constant 0 : index
    %0 = vector.load %arg1[%c0, %c0_0, %c0_1] : memref<1x4x192xf32, #tpu.memory_space<vmem>>, vector<1x4x192xf32>
    %1 = vector.shape_cast %0 : vector<1x4x192xf32> to vector<4x192xf32>
    %c0_2 = arith.constant 0 : index
    %c0_3 = arith.constant 0 : index
    %2 = vector.load %arg2[%c0_2, %c0_3] : memref<192x32xf32, #tpu.memory_space<vmem>>, vector<192x32xf32>
    %cst = arith.constant dense<0.000000e+00> : vector<4x32xf32>
    %3 = tpu.matmul %1, %2, %cst {dimension_numbers = #tpu.dot_dimension_numbers<[1], [0], [0], [1], [0, 0, 1, 1], [], []>} : vector<4x192xf32>, vector<192x32xf32>, vector<4x32xf32> -> vector<4x32xf32>
    %c0_4 = arith.constant 0 : index
    %c0_5 = arith.constant 0 : index
    %4 = vector.load %arg3[%c0_4, %c0_5] : memref<1x32xf32, #tpu.memory_space<vmem>>, vector<1x32xf32>
    %5 = vector.broadcast %4 : vector<1x32xf32> to vector<4x32xf32>
    %6 = arith.addf %3, %5 : vector<4x32xf32>
    %c0_6 = arith.constant 0 : index
    %c0_7 = arith.constant 0 : index
    %7 = vector.load %arg4[%c0_6, %c0_7] : memref<1x32xf32, #tpu.memory_space<vmem>>, vector<1x32xf32>
    %c0_8 = arith.constant 0 : index
    %c0_9 = arith.constant 0 : index
    %8 = vector.load %arg5[%c0_8, %c0_9] : memref<4x32xf32, #tpu.memory_space<vmem>>, vector<4x32xf32>
    %9 = arith.addf %6, %8 : vector<4x32xf32>
    %10 = tpu.concatenate %7, %9 in 0 : vector<1x32xf32>, vector<4x32xf32> -> vector<5x32xf32>
    %c0_10 = arith.constant 0 : index
    %c0_11 = arith.constant 0 : index
    %c0_12 = arith.constant 0 : index
    %11 = vector.load %arg6[%c0_10, %c0_11, %c0_12] : memref<2x1x32xf32, #tpu.memory_space<vmem>>, vector<1x1x32xf32>
    %12 = vector.shape_cast %11 : vector<1x1x32xf32> to vector<1x32xf32>
    %c0_13 = arith.constant 0 : index
    %c0_14 = arith.constant 0 : index
    %c0_15 = arith.constant 0 : index
    %13 = vector.load %arg7[%c0_13, %c0_14, %c0_15] : memref<2x1x32xf32, #tpu.memory_space<vmem>>, vector<1x1x32xf32>
    %14 = vector.shape_cast %13 : vector<1x1x32xf32> to vector<1x32xf32>
    %cst_16 = arith.constant dense<0.000000e+00> : vector<5xf32>
    %15 = vector.multi_reduction <add>, %10, %cst_16 [1] : vector<5x32xf32> to vector<5xf32>
    %16 = vector.shape_cast %15 : vector<5xf32> to vector<5x1xf32>
    %cst_17 = arith.constant 3.200000e+01 : f32
    %17 = vector.broadcast %cst_17 : f32 to vector<5x1xf32>
    %18 = arith.divf %16, %17 : vector<5x1xf32>
    %19 = vector.broadcast %18 : vector<5x1xf32> to vector<5x32xf32>
    %20 = arith.subf %10, %19 : vector<5x32xf32>
    %21 = arith.mulf %20, %20 : vector<5x32xf32>
    %cst_18 = arith.constant dense<0.000000e+00> : vector<5xf32>
    %22 = vector.multi_reduction <add>, %21, %cst_18 [1] : vector<5x32xf32> to vector<5xf32>
    %23 = vector.shape_cast %22 : vector<5xf32> to vector<5x1xf32>
    %cst_19 = arith.constant 3.200000e+01 : f32
    %24 = vector.broadcast %cst_19 : f32 to vector<5x1xf32>
    %25 = arith.divf %23, %24 : vector<5x1xf32>
    %cst_20 = arith.constant 9.99999997E-7 : f32
    %26 = vector.broadcast %cst_20 : f32 to vector<5x1xf32>
    %27 = arith.addf %25, %26 : vector<5x1xf32>
    %28 = math.rsqrt %27 : vector<5x1xf32>
    %29 = vector.broadcast %28 : vector<5x1xf32> to vector<5x32xf32>
    %30 = arith.mulf %20, %29 : vector<5x32xf32>
    %31 = vector.broadcast %12 : vector<1x32xf32> to vector<5x32xf32>
    %32 = arith.mulf %30, %31 : vector<5x32xf32>
    %33 = vector.broadcast %14 : vector<1x32xf32> to vector<5x32xf32>
    %34 = arith.addf %32, %33 : vector<5x32xf32>
    %c0_21 = arith.constant 0 : index
    %c0_22 = arith.constant 0 : index
    %c0_23 = arith.constant 0 : index
    %35 = vector.load %arg8[%c0_21, %c0_22, %c0_23] : memref<2x32x96xf32, #tpu.memory_space<vmem>>, vector<1x32x96xf32>
    %36 = vector.shape_cast %35 : vector<1x32x96xf32> to vector<32x96xf32>
    %cst_24 = arith.constant dense<0.000000e+00> : vector<5x96xf32>
    %37 = tpu.matmul %34, %36, %cst_24 {dimension_numbers = #tpu.dot_dimension_numbers<[1], [0], [0], [1], [0, 0, 1, 1], [], []>} : vector<5x32xf32>, vector<32x96xf32>, vector<5x96xf32> -> vector<5x96xf32>
    %c0_25 = arith.constant 0 : index
    %c0_26 = arith.constant 0 : index
    %c0_27 = arith.constant 0 : index
    %38 = vector.load %arg9[%c0_25, %c0_26, %c0_27] : memref<2x1x96xf32, #tpu.memory_space<vmem>>, vector<1x1x96xf32>
    %39 = vector.shape_cast %38 : vector<1x1x96xf32> to vector<1x96xf32>
    %40 = vector.broadcast %39 : vector<1x96xf32> to vector<5x96xf32>
    %41 = arith.addf %37, %40 : vector<5x96xf32>
    %42 = vector.extract_strided_slice %41 {offsets = [0, 0], sizes = [5, 16], strides = [1, 1]} : vector<5x96xf32> to vector<5x16xf32>
    %cst_28 = arith.constant 2.500000e-01 : f32
    %43 = vector.broadcast %cst_28 : f32 to vector<5x16xf32>
    %44 = arith.mulf %42, %43 : vector<5x16xf32>
    %45 = vector.extract_strided_slice %41 {offsets = [0, 32], sizes = [5, 16], strides = [1, 1]} : vector<5x96xf32> to vector<5x16xf32>
    %46 = vector.extract_strided_slice %41 {offsets = [0, 64], sizes = [5, 16], strides = [1, 1]} : vector<5x96xf32> to vector<5x16xf32>
    %47 = tpu.transpose %45, [1, 0] : vector<5x16xf32> -> vector<16x5xf32>
    %cst_29 = arith.constant dense<0.000000e+00> : vector<5x5xf32>
    %48 = tpu.matmul %44, %47, %cst_29 {dimension_numbers = #tpu.dot_dimension_numbers<[1], [0], [0], [1], [0, 0, 1, 1], [], []>} : vector<5x16xf32>, vector<16x5xf32>, vector<5x5xf32> -> vector<5x5xf32>
    %cst_30 = arith.constant dense<0xFF800000> : vector<5xf32>
    %49 = vector.multi_reduction <maximumf>, %48, %cst_30 [1] : vector<5x5xf32> to vector<5xf32>
    %50 = vector.shape_cast %49 : vector<5xf32> to vector<5x1xf32>
    %51 = vector.broadcast %50 : vector<5x1xf32> to vector<5x5xf32>
    %52 = arith.subf %48, %51 : vector<5x5xf32>
    %53 = math.exp %52 : vector<5x5xf32>
    %cst_31 = arith.constant dense<0.000000e+00> : vector<5xf32>
    %54 = vector.multi_reduction <add>, %53, %cst_31 [1] : vector<5x5xf32> to vector<5xf32>
    %55 = vector.shape_cast %54 : vector<5xf32> to vector<5x1xf32>
    %56 = tpu.reciprocal %55 {approx = true} : vector<5x1xf32> -> vector<5x1xf32>
    %57 = vector.broadcast %56 : vector<5x1xf32> to vector<5x5xf32>
    %58 = arith.mulf %53, %57 : vector<5x5xf32>
    %cst_32 = arith.constant dense<0.000000e+00> : vector<5x16xf32>
    %59 = tpu.matmul %58, %46, %cst_32 {dimension_numbers = #tpu.dot_dimension_numbers<[1], [0], [0], [1], [0, 0, 1, 1], [], []>} : vector<5x5xf32>, vector<5x16xf32>, vector<5x16xf32> -> vector<5x16xf32>
    %60 = vector.extract_strided_slice %41 {offsets = [0, 16], sizes = [5, 16], strides = [1, 1]} : vector<5x96xf32> to vector<5x16xf32>
    %cst_33 = arith.constant 2.500000e-01 : f32
    %61 = vector.broadcast %cst_33 : f32 to vector<5x16xf32>
    %62 = arith.mulf %60, %61 : vector<5x16xf32>
    %63 = vector.extract_strided_slice %41 {offsets = [0, 48], sizes = [5, 16], strides = [1, 1]} : vector<5x96xf32> to vector<5x16xf32>
    %64 = vector.extract_strided_slice %41 {offsets = [0, 80], sizes = [5, 16], strides = [1, 1]} : vector<5x96xf32> to vector<5x16xf32>
    %65 = tpu.transpose %63, [1, 0] : vector<5x16xf32> -> vector<16x5xf32>
    %cst_34 = arith.constant dense<0.000000e+00> : vector<5x5xf32>
    %66 = tpu.matmul %62, %65, %cst_34 {dimension_numbers = #tpu.dot_dimension_numbers<[1], [0], [0], [1], [0, 0, 1, 1], [], []>} : vector<5x16xf32>, vector<16x5xf32>, vector<5x5xf32> -> vector<5x5xf32>
    %cst_35 = arith.constant dense<0xFF800000> : vector<5xf32>
    %67 = vector.multi_reduction <maximumf>, %66, %cst_35 [1] : vector<5x5xf32> to vector<5xf32>
    %68 = vector.shape_cast %67 : vector<5xf32> to vector<5x1xf32>
    %69 = vector.broadcast %68 : vector<5x1xf32> to vector<5x5xf32>
    %70 = arith.subf %66, %69 : vector<5x5xf32>
    %71 = math.exp %70 : vector<5x5xf32>
    %cst_36 = arith.constant dense<0.000000e+00> : vector<5xf32>
    %72 = vector.multi_reduction <add>, %71, %cst_36 [1] : vector<5x5xf32> to vector<5xf32>
    %73 = vector.shape_cast %72 : vector<5xf32> to vector<5x1xf32>
    %74 = tpu.reciprocal %73 {approx = true} : vector<5x1xf32> -> vector<5x1xf32>
    %75 = vector.broadcast %74 : vector<5x1xf32> to vector<5x5xf32>
    %76 = arith.mulf %71, %75 : vector<5x5xf32>
    %cst_37 = arith.constant dense<0.000000e+00> : vector<5x16xf32>
    %77 = tpu.matmul %76, %64, %cst_37 {dimension_numbers = #tpu.dot_dimension_numbers<[1], [0], [0], [1], [0, 0, 1, 1], [], []>} : vector<5x5xf32>, vector<5x16xf32>, vector<5x16xf32> -> vector<5x16xf32>
    %78 = tpu.concatenate %59, %77 in 1 : vector<5x16xf32>, vector<5x16xf32> -> vector<5x32xf32>
    %c0_38 = arith.constant 0 : index
    %c0_39 = arith.constant 0 : index
    %c0_40 = arith.constant 0 : index
    %79 = vector.load %arg10[%c0_38, %c0_39, %c0_40] : memref<2x32x32xf32, #tpu.memory_space<vmem>>, vector<1x32x32xf32>
    %80 = vector.shape_cast %79 : vector<1x32x32xf32> to vector<32x32xf32>
    %cst_41 = arith.constant dense<0.000000e+00> : vector<5x32xf32>
    %81 = tpu.matmul %78, %80, %cst_41 {dimension_numbers = #tpu.dot_dimension_numbers<[1], [0], [0], [1], [0, 0, 1, 1], [], []>} : vector<5x32xf32>, vector<32x32xf32>, vector<5x32xf32> -> vector<5x32xf32>
    %82 = arith.addf %10, %81 : vector<5x32xf32>
    %c0_42 = arith.constant 0 : index
    %c0_43 = arith.constant 0 : index
    %c0_44 = arith.constant 0 : index
    %83 = vector.load %arg11[%c0_42, %c0_43, %c0_44] : memref<2x1x32xf32, #tpu.memory_space<vmem>>, vector<1x1x32xf32>
    %84 = vector.shape_cast %83 : vector<1x1x32xf32> to vector<1x32xf32>
    %85 = vector.broadcast %84 : vector<1x32xf32> to vector<5x32xf32>
    %86 = arith.addf %82, %85 : vector<5x32xf32>
    %c0_45 = arith.constant 0 : index
    %c0_46 = arith.constant 0 : index
    %c0_47 = arith.constant 0 : index
    %87 = vector.load %arg12[%c0_45, %c0_46, %c0_47] : memref<2x1x32xf32, #tpu.memory_space<vmem>>, vector<1x1x32xf32>
    %88 = vector.shape_cast %87 : vector<1x1x32xf32> to vector<1x32xf32>
    %c0_48 = arith.constant 0 : index
    %c0_49 = arith.constant 0 : index
    %c0_50 = arith.constant 0 : index
    %89 = vector.load %arg13[%c0_48, %c0_49, %c0_50] : memref<2x1x32xf32, #tpu.memory_space<vmem>>, vector<1x1x32xf32>
    %90 = vector.shape_cast %89 : vector<1x1x32xf32> to vector<1x32xf32>
    %cst_51 = arith.constant dense<0.000000e+00> : vector<5xf32>
    %91 = vector.multi_reduction <add>, %86, %cst_51 [1] : vector<5x32xf32> to vector<5xf32>
    %92 = vector.shape_cast %91 : vector<5xf32> to vector<5x1xf32>
    %cst_52 = arith.constant 3.200000e+01 : f32
    %93 = vector.broadcast %cst_52 : f32 to vector<5x1xf32>
    %94 = arith.divf %92, %93 : vector<5x1xf32>
    %95 = vector.broadcast %94 : vector<5x1xf32> to vector<5x32xf32>
    %96 = arith.subf %86, %95 : vector<5x32xf32>
    %97 = arith.mulf %96, %96 : vector<5x32xf32>
    %cst_53 = arith.constant dense<0.000000e+00> : vector<5xf32>
    %98 = vector.multi_reduction <add>, %97, %cst_53 [1] : vector<5x32xf32> to vector<5xf32>
    %99 = vector.shape_cast %98 : vector<5xf32> to vector<5x1xf32>
    %cst_54 = arith.constant 3.200000e+01 : f32
    %100 = vector.broadcast %cst_54 : f32 to vector<5x1xf32>
    %101 = arith.divf %99, %100 : vector<5x1xf32>
    %cst_55 = arith.constant 9.99999997E-7 : f32
    %102 = vector.broadcast %cst_55 : f32 to vector<5x1xf32>
    %103 = arith.addf %101, %102 : vector<5x1xf32>
    %104 = math.rsqrt %103 : vector<5x1xf32>
    %105 = vector.broadcast %104 : vector<5x1xf32> to vector<5x32xf32>
    %106 = arith.mulf %96, %105 : vector<5x32xf32>
    %107 = vector.broadcast %88 : vector<1x32xf32> to vector<5x32xf32>
    %108 = arith.mulf %106, %107 : vector<5x32xf32>
    %109 = vector.broadcast %90 : vector<1x32xf32> to vector<5x32xf32>
    %110 = arith.addf %108, %109 : vector<5x32xf32>
    %c0_56 = arith.constant 0 : index
    %c0_57 = arith.constant 0 : index
    %c0_58 = arith.constant 0 : index
    %111 = vector.load %arg14[%c0_56, %c0_57, %c0_58] : memref<2x32x128xf32, #tpu.memory_space<vmem>>, vector<1x32x128xf32>
    %112 = vector.shape_cast %111 : vector<1x32x128xf32> to vector<32x128xf32>
    %cst_59 = arith.constant dense<0.000000e+00> : vector<5x128xf32>
    %113 = tpu.matmul %110, %112, %cst_59 {dimension_numbers = #tpu.dot_dimension_numbers<[1], [0], [0], [1], [0, 0, 1, 1], [], []>} : vector<5x32xf32>, vector<32x128xf32>, vector<5x128xf32> -> vector<5x128xf32>
    %c0_60 = arith.constant 0 : index
    %c0_61 = arith.constant 0 : index
    %c0_62 = arith.constant 0 : index
    %114 = vector.load %arg15[%c0_60, %c0_61, %c0_62] : memref<2x1x128xf32, #tpu.memory_space<vmem>>, vector<1x1x128xf32>
    %115 = vector.shape_cast %114 : vector<1x1x128xf32> to vector<1x128xf32>
    %116 = vector.broadcast %115 : vector<1x128xf32> to vector<5x128xf32>
    %117 = arith.addf %113, %116 : vector<5x128xf32>
    %118 = arith.mulf %117, %117 : vector<5x128xf32>
    %119 = arith.mulf %117, %118 : vector<5x128xf32>
    %cst_63 = arith.constant 4.471500e-02 : f32
    %120 = vector.broadcast %cst_63 : f32 to vector<5x128xf32>
    %121 = arith.mulf %120, %119 : vector<5x128xf32>
    %122 = arith.addf %117, %121 : vector<5x128xf32>
    %cst_64 = arith.constant 0.797884583 : f32
    %123 = vector.broadcast %cst_64 : f32 to vector<5x128xf32>
    %124 = arith.mulf %123, %122 : vector<5x128xf32>
    %125 = math.tanh %124 : vector<5x128xf32>
    %cst_65 = arith.constant 1.000000e+00 : f32
    %126 = vector.broadcast %cst_65 : f32 to vector<5x128xf32>
    %127 = arith.addf %126, %125 : vector<5x128xf32>
    %cst_66 = arith.constant 5.000000e-01 : f32
    %128 = vector.broadcast %cst_66 : f32 to vector<5x128xf32>
    %129 = arith.mulf %128, %127 : vector<5x128xf32>
    %130 = arith.mulf %117, %129 : vector<5x128xf32>
    %c0_67 = arith.constant 0 : index
    %c0_68 = arith.constant 0 : index
    %c0_69 = arith.constant 0 : index
    %131 = vector.load %arg16[%c0_67, %c0_68, %c0_69] : memref<2x128x32xf32, #tpu.memory_space<vmem>>, vector<1x128x32xf32>
    %132 = vector.shape_cast %131 : vector<1x128x32xf32> to vector<128x32xf32>
    %cst_70 = arith.constant dense<0.000000e+00> : vector<5x32xf32>
    %133 = tpu.matmul %130, %132, %cst_70 {dimension_numbers = #tpu.dot_dimension_numbers<[1], [0], [0], [1], [0, 0, 1, 1], [], []>} : vector<5x128xf32>, vector<128x32xf32>, vector<5x32xf32> -> vector<5x32xf32>
    %134 = arith.addf %86, %133 : vector<5x32xf32>
    %c0_71 = arith.constant 0 : index
    %c0_72 = arith.constant 0 : index
    %c0_73 = arith.constant 0 : index
    %135 = vector.load %arg17[%c0_71, %c0_72, %c0_73] : memref<2x1x32xf32, #tpu.memory_space<vmem>>, vector<1x1x32xf32>
    %136 = vector.shape_cast %135 : vector<1x1x32xf32> to vector<1x32xf32>
    %137 = vector.broadcast %136 : vector<1x32xf32> to vector<5x32xf32>
    %138 = arith.addf %134, %137 : vector<5x32xf32>
    %c1 = arith.constant 1 : index
    %c0_74 = arith.constant 0 : index
    %c0_75 = arith.constant 0 : index
    %139 = vector.load %arg6[%c1, %c0_74, %c0_75] : memref<2x1x32xf32, #tpu.memory_space<vmem>>, vector<1x1x32xf32>
    %140 = vector.shape_cast %139 : vector<1x1x32xf32> to vector<1x32xf32>
    %c1_76 = arith.constant 1 : index
    %c0_77 = arith.constant 0 : index
    %c0_78 = arith.constant 0 : index
    %141 = vector.load %arg7[%c1_76, %c0_77, %c0_78] : memref<2x1x32xf32, #tpu.memory_space<vmem>>, vector<1x1x32xf32>
    %142 = vector.shape_cast %141 : vector<1x1x32xf32> to vector<1x32xf32>
    %cst_79 = arith.constant dense<0.000000e+00> : vector<5xf32>
    %143 = vector.multi_reduction <add>, %138, %cst_79 [1] : vector<5x32xf32> to vector<5xf32>
    %144 = vector.shape_cast %143 : vector<5xf32> to vector<5x1xf32>
    %cst_80 = arith.constant 3.200000e+01 : f32
    %145 = vector.broadcast %cst_80 : f32 to vector<5x1xf32>
    %146 = arith.divf %144, %145 : vector<5x1xf32>
    %147 = vector.broadcast %146 : vector<5x1xf32> to vector<5x32xf32>
    %148 = arith.subf %138, %147 : vector<5x32xf32>
    %149 = arith.mulf %148, %148 : vector<5x32xf32>
    %cst_81 = arith.constant dense<0.000000e+00> : vector<5xf32>
    %150 = vector.multi_reduction <add>, %149, %cst_81 [1] : vector<5x32xf32> to vector<5xf32>
    %151 = vector.shape_cast %150 : vector<5xf32> to vector<5x1xf32>
    %cst_82 = arith.constant 3.200000e+01 : f32
    %152 = vector.broadcast %cst_82 : f32 to vector<5x1xf32>
    %153 = arith.divf %151, %152 : vector<5x1xf32>
    %cst_83 = arith.constant 9.99999997E-7 : f32
    %154 = vector.broadcast %cst_83 : f32 to vector<5x1xf32>
    %155 = arith.addf %153, %154 : vector<5x1xf32>
    %156 = math.rsqrt %155 : vector<5x1xf32>
    %157 = vector.broadcast %156 : vector<5x1xf32> to vector<5x32xf32>
    %158 = arith.mulf %148, %157 : vector<5x32xf32>
    %159 = vector.broadcast %140 : vector<1x32xf32> to vector<5x32xf32>
    %160 = arith.mulf %158, %159 : vector<5x32xf32>
    %161 = vector.broadcast %142 : vector<1x32xf32> to vector<5x32xf32>
    %162 = arith.addf %160, %161 : vector<5x32xf32>
    %c1_84 = arith.constant 1 : index
    %c0_85 = arith.constant 0 : index
    %c0_86 = arith.constant 0 : index
    %163 = vector.load %arg8[%c1_84, %c0_85, %c0_86] : memref<2x32x96xf32, #tpu.memory_space<vmem>>, vector<1x32x96xf32>
    %164 = vector.shape_cast %163 : vector<1x32x96xf32> to vector<32x96xf32>
    %cst_87 = arith.constant dense<0.000000e+00> : vector<5x96xf32>
    %165 = tpu.matmul %162, %164, %cst_87 {dimension_numbers = #tpu.dot_dimension_numbers<[1], [0], [0], [1], [0, 0, 1, 1], [], []>} : vector<5x32xf32>, vector<32x96xf32>, vector<5x96xf32> -> vector<5x96xf32>
    %c1_88 = arith.constant 1 : index
    %c0_89 = arith.constant 0 : index
    %c0_90 = arith.constant 0 : index
    %166 = vector.load %arg9[%c1_88, %c0_89, %c0_90] : memref<2x1x96xf32, #tpu.memory_space<vmem>>, vector<1x1x96xf32>
    %167 = vector.shape_cast %166 : vector<1x1x96xf32> to vector<1x96xf32>
    %168 = vector.broadcast %167 : vector<1x96xf32> to vector<5x96xf32>
    %169 = arith.addf %165, %168 : vector<5x96xf32>
    %170 = vector.extract_strided_slice %169 {offsets = [0, 0], sizes = [5, 16], strides = [1, 1]} : vector<5x96xf32> to vector<5x16xf32>
    %cst_91 = arith.constant 2.500000e-01 : f32
    %171 = vector.broadcast %cst_91 : f32 to vector<5x16xf32>
    %172 = arith.mulf %170, %171 : vector<5x16xf32>
    %173 = vector.extract_strided_slice %169 {offsets = [0, 32], sizes = [5, 16], strides = [1, 1]} : vector<5x96xf32> to vector<5x16xf32>
    %174 = vector.extract_strided_slice %169 {offsets = [0, 64], sizes = [5, 16], strides = [1, 1]} : vector<5x96xf32> to vector<5x16xf32>
    %175 = tpu.transpose %173, [1, 0] : vector<5x16xf32> -> vector<16x5xf32>
    %cst_92 = arith.constant dense<0.000000e+00> : vector<5x5xf32>
    %176 = tpu.matmul %172, %175, %cst_92 {dimension_numbers = #tpu.dot_dimension_numbers<[1], [0], [0], [1], [0, 0, 1, 1], [], []>} : vector<5x16xf32>, vector<16x5xf32>, vector<5x5xf32> -> vector<5x5xf32>
    %cst_93 = arith.constant dense<0xFF800000> : vector<5xf32>
    %177 = vector.multi_reduction <maximumf>, %176, %cst_93 [1] : vector<5x5xf32> to vector<5xf32>
    %178 = vector.shape_cast %177 : vector<5xf32> to vector<5x1xf32>
    %179 = vector.broadcast %178 : vector<5x1xf32> to vector<5x5xf32>
    %180 = arith.subf %176, %179 : vector<5x5xf32>
    %181 = math.exp %180 : vector<5x5xf32>
    %cst_94 = arith.constant dense<0.000000e+00> : vector<5xf32>
    %182 = vector.multi_reduction <add>, %181, %cst_94 [1] : vector<5x5xf32> to vector<5xf32>
    %183 = vector.shape_cast %182 : vector<5xf32> to vector<5x1xf32>
    %184 = tpu.reciprocal %183 {approx = true} : vector<5x1xf32> -> vector<5x1xf32>
    %185 = vector.broadcast %184 : vector<5x1xf32> to vector<5x5xf32>
    %186 = arith.mulf %181, %185 : vector<5x5xf32>
    %cst_95 = arith.constant dense<0.000000e+00> : vector<5x16xf32>
    %187 = tpu.matmul %186, %174, %cst_95 {dimension_numbers = #tpu.dot_dimension_numbers<[1], [0], [0], [1], [0, 0, 1, 1], [], []>} : vector<5x5xf32>, vector<5x16xf32>, vector<5x16xf32> -> vector<5x16xf32>
    %188 = vector.extract_strided_slice %169 {offsets = [0, 16], sizes = [5, 16], strides = [1, 1]} : vector<5x96xf32> to vector<5x16xf32>
    %cst_96 = arith.constant 2.500000e-01 : f32
    %189 = vector.broadcast %cst_96 : f32 to vector<5x16xf32>
    %190 = arith.mulf %188, %189 : vector<5x16xf32>
    %191 = vector.extract_strided_slice %169 {offsets = [0, 48], sizes = [5, 16], strides = [1, 1]} : vector<5x96xf32> to vector<5x16xf32>
    %192 = vector.extract_strided_slice %169 {offsets = [0, 80], sizes = [5, 16], strides = [1, 1]} : vector<5x96xf32> to vector<5x16xf32>
    %193 = tpu.transpose %191, [1, 0] : vector<5x16xf32> -> vector<16x5xf32>
    %cst_97 = arith.constant dense<0.000000e+00> : vector<5x5xf32>
    %194 = tpu.matmul %190, %193, %cst_97 {dimension_numbers = #tpu.dot_dimension_numbers<[1], [0], [0], [1], [0, 0, 1, 1], [], []>} : vector<5x16xf32>, vector<16x5xf32>, vector<5x5xf32> -> vector<5x5xf32>
    %cst_98 = arith.constant dense<0xFF800000> : vector<5xf32>
    %195 = vector.multi_reduction <maximumf>, %194, %cst_98 [1] : vector<5x5xf32> to vector<5xf32>
    %196 = vector.shape_cast %195 : vector<5xf32> to vector<5x1xf32>
    %197 = vector.broadcast %196 : vector<5x1xf32> to vector<5x5xf32>
    %198 = arith.subf %194, %197 : vector<5x5xf32>
    %199 = math.exp %198 : vector<5x5xf32>
    %cst_99 = arith.constant dense<0.000000e+00> : vector<5xf32>
    %200 = vector.multi_reduction <add>, %199, %cst_99 [1] : vector<5x5xf32> to vector<5xf32>
    %201 = vector.shape_cast %200 : vector<5xf32> to vector<5x1xf32>
    %202 = tpu.reciprocal %201 {approx = true} : vector<5x1xf32> -> vector<5x1xf32>
    %203 = vector.broadcast %202 : vector<5x1xf32> to vector<5x5xf32>
    %204 = arith.mulf %199, %203 : vector<5x5xf32>
    %cst_100 = arith.constant dense<0.000000e+00> : vector<5x16xf32>
    %205 = tpu.matmul %204, %192, %cst_100 {dimension_numbers = #tpu.dot_dimension_numbers<[1], [0], [0], [1], [0, 0, 1, 1], [], []>} : vector<5x5xf32>, vector<5x16xf32>, vector<5x16xf32> -> vector<5x16xf32>
    %206 = tpu.concatenate %187, %205 in 1 : vector<5x16xf32>, vector<5x16xf32> -> vector<5x32xf32>
    %c1_101 = arith.constant 1 : index
    %c0_102 = arith.constant 0 : index
    %c0_103 = arith.constant 0 : index
    %207 = vector.load %arg10[%c1_101, %c0_102, %c0_103] : memref<2x32x32xf32, #tpu.memory_space<vmem>>, vector<1x32x32xf32>
    %208 = vector.shape_cast %207 : vector<1x32x32xf32> to vector<32x32xf32>
    %cst_104 = arith.constant dense<0.000000e+00> : vector<5x32xf32>
    %209 = tpu.matmul %206, %208, %cst_104 {dimension_numbers = #tpu.dot_dimension_numbers<[1], [0], [0], [1], [0, 0, 1, 1], [], []>} : vector<5x32xf32>, vector<32x32xf32>, vector<5x32xf32> -> vector<5x32xf32>
    %210 = arith.addf %138, %209 : vector<5x32xf32>
    %c1_105 = arith.constant 1 : index
    %c0_106 = arith.constant 0 : index
    %c0_107 = arith.constant 0 : index
    %211 = vector.load %arg11[%c1_105, %c0_106, %c0_107] : memref<2x1x32xf32, #tpu.memory_space<vmem>>, vector<1x1x32xf32>
    %212 = vector.shape_cast %211 : vector<1x1x32xf32> to vector<1x32xf32>
    %213 = vector.broadcast %212 : vector<1x32xf32> to vector<5x32xf32>
    %214 = arith.addf %210, %213 : vector<5x32xf32>
    %c1_108 = arith.constant 1 : index
    %c0_109 = arith.constant 0 : index
    %c0_110 = arith.constant 0 : index
    %215 = vector.load %arg12[%c1_108, %c0_109, %c0_110] : memref<2x1x32xf32, #tpu.memory_space<vmem>>, vector<1x1x32xf32>
    %216 = vector.shape_cast %215 : vector<1x1x32xf32> to vector<1x32xf32>
    %c1_111 = arith.constant 1 : index
    %c0_112 = arith.constant 0 : index
    %c0_113 = arith.constant 0 : index
    %217 = vector.load %arg13[%c1_111, %c0_112, %c0_113] : memref<2x1x32xf32, #tpu.memory_space<vmem>>, vector<1x1x32xf32>
    %218 = vector.shape_cast %217 : vector<1x1x32xf32> to vector<1x32xf32>
    %cst_114 = arith.constant dense<0.000000e+00> : vector<5xf32>
    %219 = vector.multi_reduction <add>, %214, %cst_114 [1] : vector<5x32xf32> to vector<5xf32>
    %220 = vector.shape_cast %219 : vector<5xf32> to vector<5x1xf32>
    %cst_115 = arith.constant 3.200000e+01 : f32
    %221 = vector.broadcast %cst_115 : f32 to vector<5x1xf32>
    %222 = arith.divf %220, %221 : vector<5x1xf32>
    %223 = vector.broadcast %222 : vector<5x1xf32> to vector<5x32xf32>
    %224 = arith.subf %214, %223 : vector<5x32xf32>
    %225 = arith.mulf %224, %224 : vector<5x32xf32>
    %cst_116 = arith.constant dense<0.000000e+00> : vector<5xf32>
    %226 = vector.multi_reduction <add>, %225, %cst_116 [1] : vector<5x32xf32> to vector<5xf32>
    %227 = vector.shape_cast %226 : vector<5xf32> to vector<5x1xf32>
    %cst_117 = arith.constant 3.200000e+01 : f32
    %228 = vector.broadcast %cst_117 : f32 to vector<5x1xf32>
    %229 = arith.divf %227, %228 : vector<5x1xf32>
    %cst_118 = arith.constant 9.99999997E-7 : f32
    %230 = vector.broadcast %cst_118 : f32 to vector<5x1xf32>
    %231 = arith.addf %229, %230 : vector<5x1xf32>
    %232 = math.rsqrt %231 : vector<5x1xf32>
    %233 = vector.broadcast %232 : vector<5x1xf32> to vector<5x32xf32>
    %234 = arith.mulf %224, %233 : vector<5x32xf32>
    %235 = vector.broadcast %216 : vector<1x32xf32> to vector<5x32xf32>
    %236 = arith.mulf %234, %235 : vector<5x32xf32>
    %237 = vector.broadcast %218 : vector<1x32xf32> to vector<5x32xf32>
    %238 = arith.addf %236, %237 : vector<5x32xf32>
    %c1_119 = arith.constant 1 : index
    %c0_120 = arith.constant 0 : index
    %c0_121 = arith.constant 0 : index
    %239 = vector.load %arg14[%c1_119, %c0_120, %c0_121] : memref<2x32x128xf32, #tpu.memory_space<vmem>>, vector<1x32x128xf32>
    %240 = vector.shape_cast %239 : vector<1x32x128xf32> to vector<32x128xf32>
    %cst_122 = arith.constant dense<0.000000e+00> : vector<5x128xf32>
    %241 = tpu.matmul %238, %240, %cst_122 {dimension_numbers = #tpu.dot_dimension_numbers<[1], [0], [0], [1], [0, 0, 1, 1], [], []>} : vector<5x32xf32>, vector<32x128xf32>, vector<5x128xf32> -> vector<5x128xf32>
    %c1_123 = arith.constant 1 : index
    %c0_124 = arith.constant 0 : index
    %c0_125 = arith.constant 0 : index
    %242 = vector.load %arg15[%c1_123, %c0_124, %c0_125] : memref<2x1x128xf32, #tpu.memory_space<vmem>>, vector<1x1x128xf32>
    %243 = vector.shape_cast %242 : vector<1x1x128xf32> to vector<1x128xf32>
    %244 = vector.broadcast %243 : vector<1x128xf32> to vector<5x128xf32>
    %245 = arith.addf %241, %244 : vector<5x128xf32>
    %246 = arith.mulf %245, %245 : vector<5x128xf32>
    %247 = arith.mulf %245, %246 : vector<5x128xf32>
    %cst_126 = arith.constant 4.471500e-02 : f32
    %248 = vector.broadcast %cst_126 : f32 to vector<5x128xf32>
    %249 = arith.mulf %248, %247 : vector<5x128xf32>
    %250 = arith.addf %245, %249 : vector<5x128xf32>
    %cst_127 = arith.constant 0.797884583 : f32
    %251 = vector.broadcast %cst_127 : f32 to vector<5x128xf32>
    %252 = arith.mulf %251, %250 : vector<5x128xf32>
    %253 = math.tanh %252 : vector<5x128xf32>
    %cst_128 = arith.constant 1.000000e+00 : f32
    %254 = vector.broadcast %cst_128 : f32 to vector<5x128xf32>
    %255 = arith.addf %254, %253 : vector<5x128xf32>
    %cst_129 = arith.constant 5.000000e-01 : f32
    %256 = vector.broadcast %cst_129 : f32 to vector<5x128xf32>
    %257 = arith.mulf %256, %255 : vector<5x128xf32>
    %258 = arith.mulf %245, %257 : vector<5x128xf32>
    %c1_130 = arith.constant 1 : index
    %c0_131 = arith.constant 0 : index
    %c0_132 = arith.constant 0 : index
    %259 = vector.load %arg16[%c1_130, %c0_131, %c0_132] : memref<2x128x32xf32, #tpu.memory_space<vmem>>, vector<1x128x32xf32>
    %260 = vector.shape_cast %259 : vector<1x128x32xf32> to vector<128x32xf32>
    %cst_133 = arith.constant dense<0.000000e+00> : vector<5x32xf32>
    %261 = tpu.matmul %258, %260, %cst_133 {dimension_numbers = #tpu.dot_dimension_numbers<[1], [0], [0], [1], [0, 0, 1, 1], [], []>} : vector<5x128xf32>, vector<128x32xf32>, vector<5x32xf32> -> vector<5x32xf32>
    %262 = arith.addf %214, %261 : vector<5x32xf32>
    %c1_134 = arith.constant 1 : index
    %c0_135 = arith.constant 0 : index
    %c0_136 = arith.constant 0 : index
    %263 = vector.load %arg17[%c1_134, %c0_135, %c0_136] : memref<2x1x32xf32, #tpu.memory_space<vmem>>, vector<1x1x32xf32>
    %264 = vector.shape_cast %263 : vector<1x1x32xf32> to vector<1x32xf32>
    %265 = vector.broadcast %264 : vector<1x32xf32> to vector<5x32xf32>
    %266 = arith.addf %262, %265 : vector<5x32xf32>
    %267 = vector.extract_strided_slice %266 {offsets = [0, 0], sizes = [1, 32], strides = [1, 1]} : vector<5x32xf32> to vector<1x32xf32>
    %c0_137 = arith.constant 0 : index
    %c0_138 = arith.constant 0 : index
    %268 = vector.load %arg18[%c0_137, %c0_138] : memref<1x32xf32, #tpu.memory_space<vmem>>, vector<1x32xf32>
    %c0_139 = arith.constant 0 : index
    %c0_140 = arith.constant 0 : index
    %269 = vector.load %arg19[%c0_139, %c0_140] : memref<1x32xf32, #tpu.memory_space<vmem>>, vector<1x32xf32>
    %cst_141 = arith.constant dense<0.000000e+00> : vector<1xf32>
    %270 = vector.multi_reduction <add>, %267, %cst_141 [1] : vector<1x32xf32> to vector<1xf32>
    %271 = vector.shape_cast %270 : vector<1xf32> to vector<1x1xf32>
    %cst_142 = arith.constant 3.200000e+01 : f32
    %272 = vector.broadcast %cst_142 : f32 to vector<1x1xf32>
    %273 = arith.divf %271, %272 : vector<1x1xf32>
    %274 = vector.broadcast %273 : vector<1x1xf32> to vector<1x32xf32>
    %275 = arith.subf %267, %274 : vector<1x32xf32>
    %276 = arith.mulf %275, %275 : vector<1x32xf32>
    %cst_143 = arith.constant dense<0.000000e+00> : vector<1xf32>
    %277 = vector.multi_reduction <add>, %276, %cst_143 [1] : vector<1x32xf32> to vector<1xf32>
    %278 = vector.shape_cast %277 : vector<1xf32> to vector<1x1xf32>
    %cst_144 = arith.constant 3.200000e+01 : f32
    %279 = vector.broadcast %cst_144 : f32 to vector<1x1xf32>
    %280 = arith.divf %278, %279 : vector<1x1xf32>
    %cst_145 = arith.constant 9.99999997E-7 : f32
    %281 = vector.broadcast %cst_145 : f32 to vector<1x1xf32>
    %282 = arith.addf %280, %281 : vector<1x1xf32>
    %283 = math.rsqrt %282 : vector<1x1xf32>
    %284 = vector.broadcast %283 : vector<1x1xf32> to vector<1x32xf32>
    %285 = arith.mulf %275, %284 : vector<1x32xf32>
    %286 = arith.mulf %285, %268 : vector<1x32xf32>
    %287 = arith.addf %286, %269 : vector<1x32xf32>
    %c0_146 = arith.constant 0 : index
    %c0_147 = arith.constant 0 : index
    %288 = vector.load %arg20[%c0_146, %c0_147] : memref<32x128xf32, #tpu.memory_space<vmem>>, vector<32x128xf32>
    %cst_148 = arith.constant dense<0.000000e+00> : vector<1x128xf32>
    %289 = tpu.matmul %287, %288, %cst_148 {dimension_numbers = #tpu.dot_dimension_numbers<[1], [0], [0], [1], [0, 0, 1, 1], [], []>} : vector<1x32xf32>, vector<32x128xf32>, vector<1x128xf32> -> vector<1x128xf32>
    %c0_149 = arith.constant 0 : index
    %c0_150 = arith.constant 0 : index
    %290 = vector.load %arg21[%c0_149, %c0_150] : memref<1x128xf32, #tpu.memory_space<vmem>>, vector<1x128xf32>
    %291 = arith.addf %289, %290 : vector<1x128xf32>
    %c0_151 = arith.constant 0 : index
    %c0_152 = arith.constant 0 : index
    %c0_153 = arith.constant 0 : index
    %292 = vector.load %arg22[%c0_151, %c0_152, %c0_153] : memref<1x1x128xf32, #tpu.memory_space<vmem>>, vector<1x1x128xf32>
    %293 = vector.shape_cast %292 : vector<1x1x128xf32> to vector<1x128xf32>
    %294 = vector.shape_cast %291 : vector<1x128xf32> to vector<1x1x128xf32>
    tpu.vector_store %arg22[%c0_151, %c0_152, %c0_153], %294 {strides = array<i32>} : memref<1x1x128xf32, #tpu.memory_space<vmem>>, vector<1x1x128xf32>,
    return
  }
  func.func @transform_0(%arg0: i32) -> (i32, i32, i32) {
    %c0_i32 = arith.constant 0 : i32
    %c0_i32_0 = arith.constant 0 : i32
    %c0_i32_1 = arith.constant 0 : i32
    return %arg0, %c0_i32, %c0_i32_0 : i32, i32, i32
  }
  func.func @transform_1(%arg0: i32) -> (i32, i32) {
    %c0_i32 = arith.constant 0 : i32
    %c0_i32_0 = arith.constant 0 : i32
    %c0_i32_1 = arith.constant 0 : i32
    return %c0_i32, %c0_i32_0 : i32, i32
  }
  func.func @transform_2(%arg0: i32) -> (i32, i32) {
    %c0_i32 = arith.constant 0 : i32
    %c0_i32_0 = arith.constant 0 : i32
    %c0_i32_1 = arith.constant 0 : i32
    return %c0_i32, %c0_i32_0 : i32, i32
  }
  func.func @transform_3(%arg0: i32) -> (i32, i32) {
    %c0_i32 = arith.constant 0 : i32
    %c0_i32_0 = arith.constant 0 : i32
    %c0_i32_1 = arith.constant 0 : i32
    return %c0_i32, %c0_i32_0 : i32, i32
  }
  func.func @transform_4(%arg0: i32) -> (i32, i32) {
    %c0_i32 = arith.constant 0 : i32
    %c0_i32_0 = arith.constant 0 : i32
    %c0_i32_1 = arith.constant 0 : i32
    return %c0_i32, %c0_i32_0 : i32, i32
  }
  func.func @transform_5(%arg0: i32) -> (i32, i32, i32) {
    %c0_i32 = arith.constant 0 : i32
    %c0_i32_0 = arith.constant 0 : i32
    %c0_i32_1 = arith.constant 0 : i32
    %c0_i32_2 = arith.constant 0 : i32
    return %c0_i32, %c0_i32_0, %c0_i32_1 : i32, i32, i32
  }
  func.func @transform_6(%arg0: i32) -> (i32, i32, i32) {
    %c0_i32 = arith.constant 0 : i32
    %c0_i32_0 = arith.constant 0 : i32
    %c0_i32_1 = arith.constant 0 : i32
    %c0_i32_2 = arith.constant 0 : i32
    return %c0_i32, %c0_i32_0, %c0_i32_1 : i32, i32, i32
  }
  func.func @transform_7(%arg0: i32) -> (i32, i32, i32) {
    %c0_i32 = arith.constant 0 : i32
    %c0_i32_0 = arith.constant 0 : i32
    %c0_i32_1 = arith.constant 0 : i32
    %c0_i32_2 = arith.constant 0 : i32
    return %c0_i32, %c0_i32_0, %c0_i32_1 : i32, i32, i32
  }
  func.func @transform_8(%arg0: i32) -> (i32, i32, i32) {
    %c0_i32 = arith.constant 0 : i32
    %c0_i32_0 = arith.constant 0 : i32
    %c0_i32_1 = arith.constant 0 : i32
    %c0_i32_2 = arith.constant 0 : i32
    return %c0_i32, %c0_i32_0, %c0_i32_1 : i32, i32, i32
  }
  func.func @transform_9(%arg0: i32) -> (i32, i32, i32) {
    %c0_i32 = arith.constant 0 : i32
    %c0_i32_0 = arith.constant 0 : i32
    %c0_i32_1 = arith.constant 0 : i32
    %c0_i32_2 = arith.constant 0 : i32
    return %c0_i32, %c0_i32_0, %c0_i32_1 : i32, i32, i32
  }
  func.func @transform_10(%arg0: i32) -> (i32, i32, i32) {
    %c0_i32 = arith.constant 0 : i32
    %c0_i32_0 = arith.constant 0 : i32
    %c0_i32_1 = arith.constant 0 : i32
    %c0_i32_2 = arith.constant 0 : i32
    return %c0_i32, %c0_i32_0, %c0_i32_1 : i32, i32, i32
  }
  func.func @transform_11(%arg0: i32) -> (i32, i32, i32) {
    %c0_i32 = arith.constant 0 : i32
    %c0_i32_0 = arith.constant 0 : i32
    %c0_i32_1 = arith.constant 0 : i32
    %c0_i32_2 = arith.constant 0 : i32
    return %c0_i32, %c0_i32_0, %c0_i32_1 : i32, i32, i32
  }
  func.func @transform_12(%arg0: i32) -> (i32, i32, i32) {
    %c0_i32 = arith.constant 0 : i32
    %c0_i32_0 = arith.constant 0 : i32
    %c0_i32_1 = arith.constant 0 : i32
    %c0_i32_2 = arith.constant 0 : i32
    return %c0_i32, %c0_i32_0, %c0_i32_1 : i32, i32, i32
  }
  func.func @transform_13(%arg0: i32) -> (i32, i32, i32) {
    %c0_i32 = arith.constant 0 : i32
    %c0_i32_0 = arith.constant 0 : i32
    %c0_i32_1 = arith.constant 0 : i32
    %c0_i32_2 = arith.constant 0 : i32
    return %c0_i32, %c0_i32_0, %c0_i32_1 : i32, i32, i32
  }
  func.func @transform_14(%arg0: i32) -> (i32, i32, i32) {
    %c0_i32 = arith.constant 0 : i32
    %c0_i32_0 = arith.constant 0 : i32
    %c0_i32_1 = arith.constant 0 : i32
    %c0_i32_2 = arith.constant 0 : i32
    return %c0_i32, %c0_i32_0, %c0_i32_1 : i32, i32, i32
  }
  func.func @transform_15(%arg0: i32) -> (i32, i32, i32) {
    %c0_i32 = arith.constant 0 : i32
    %c0_i32_0 = arith.constant 0 : i32
    %c0_i32_1 = arith.constant 0 : i32
    %c0_i32_2 = arith.constant 0 : i32
    return %c0_i32, %c0_i32_0, %c0_i32_1 : i32, i32, i32
  }
  func.func @transform_16(%arg0: i32) -> (i32, i32, i32) {
    %c0_i32 = arith.constant 0 : i32
    %c0_i32_0 = arith.constant 0 : i32
    %c0_i32_1 = arith.constant 0 : i32
    %c0_i32_2 = arith.constant 0 : i32
    return %c0_i32, %c0_i32_0, %c0_i32_1 : i32, i32, i32
  }
  func.func @transform_17(%arg0: i32) -> (i32, i32) {
    %c0_i32 = arith.constant 0 : i32
    %c0_i32_0 = arith.constant 0 : i32
    %c0_i32_1 = arith.constant 0 : i32
    return %c0_i32, %c0_i32_0 : i32, i32
  }
  func.func @transform_18(%arg0: i32) -> (i32, i32) {
    %c0_i32 = arith.constant 0 : i32
    %c0_i32_0 = arith.constant 0 : i32
    %c0_i32_1 = arith.constant 0 : i32
    return %c0_i32, %c0_i32_0 : i32, i32
  }
  func.func @transform_19(%arg0: i32) -> (i32, i32) {
    %c0_i32 = arith.constant 0 : i32
    %c0_i32_0 = arith.constant 0 : i32
    %c0_i32_1 = arith.constant 0 : i32
    return %c0_i32, %c0_i32_0 : i32, i32
  }
  func.func @transform_20(%arg0: i32) -> (i32, i32) {
    %c0_i32 = arith.constant 0 : i32
    %c0_i32_0 = arith.constant 0 : i32
    %c0_i32_1 = arith.constant 0 : i32
    return %c0_i32, %c0_i32_0 : i32, i32
  }
  func.func @transform_21(%arg0: i32) -> (i32, i32, i32) {
    %c0_i32 = arith.constant 0 : i32
    %c0_i32_0 = arith.constant 0 : i32
    %c0_i32_1 = arith.constant 0 : i32
    return %arg0, %c0_i32, %c0_i32_0 : i32, i32, i32
  }
}

</mosaic_0001>

<llo_original>
// kernel: lora_vit_forward.1
$region0: #{lora_vit_forward.1}
  #allocation0 [shape = 'u32[]', space=smem, size = 0x4, offset = 0x4, fixed_abs, tag = 'smem constant byte address 0x4 - core index']
  #allocation1 [shape = 'u32[72,128]{1,0:T(1,128)}', space=vmem, size = 0x9000, scoped, tag = 'internal scratch']
  %s0 = inlined_call_operand.vmem [shape: f32[2,4,192], index: 0, kind: input, shape index: {}]
  %s1 = inlined_call_operand.vmem [shape: f32[192,32], index: 1, kind: input, shape index: {}]
  %s2 = inlined_call_operand.vmem [shape: f32[1,32], index: 2, kind: input, shape index: {}]
  %s3 = inlined_call_operand.vmem [shape: f32[1,32], index: 3, kind: input, shape index: {}]
  %s4 = inlined_call_operand.vmem [shape: f32[4,32], index: 4, kind: input, shape index: {}]
  %s5 = inlined_call_operand.vmem [shape: f32[2,1,32], index: 5, kind: input, shape index: {}]
  %s6 = inlined_call_operand.vmem [shape: f32[2,1,32], index: 6, kind: input, shape index: {}]
  %s7 = inlined_call_operand.vmem [shape: f32[2,32,96], index: 7, kind: input, shape index: {}]
  %s8 = inlined_call_operand.vmem [shape: f32[2,1,96], index: 8, kind: input, shape index: {}]
  %s9 = inlined_call_operand.vmem [shape: f32[2,32,32], index: 9, kind: input, shape index: {}]
  %s10 = inlined_call_operand.vmem [shape: f32[2,1,32], index: 10, kind: input, shape index: {}]
  %s11 = inlined_call_operand.vmem [shape: f32[2,1,32], index: 11, kind: input, shape index: {}]
  %s12 = inlined_call_operand.vmem [shape: f32[2,1,32], index: 12, kind: input, shape index: {}]
  %s13 = inlined_call_operand.vmem [shape: f32[2,32,128], index: 13, kind: input, shape index: {}]
  %s14 = inlined_call_operand.vmem [shape: f32[2,1,128], index: 14, kind: input, shape index: {}]
  %s15 = inlined_call_operand.vmem [shape: f32[2,128,32], index: 15, kind: input, shape index: {}]
  %s16 = inlined_call_operand.vmem [shape: f32[2,1,32], index: 16, kind: input, shape index: {}]
  %s17 = inlined_call_operand.vmem [shape: f32[1,32], index: 17, kind: input, shape index: {}]
  %s18 = inlined_call_operand.vmem [shape: f32[1,32], index: 18, kind: input, shape index: {}]
  %s19 = inlined_call_operand.vmem [shape: f32[32,128], index: 19, kind: input, shape index: {}]
  %s20 = inlined_call_operand.vmem [shape: f32[1,128], index: 20, kind: input, shape index: {}]
  %s21 = inlined_call_operand.hbm [shape: f32[2,1,128], index: 21, kind: output, shape index: {}]
  %s22 = sld [smem:[#allocation0]]
  $region117: #{lora_vit_forward.1} parent=0
    _
  %s24 = ssub.s32 1, %s22
  %s25 = scalar_select 0, %s24, %s22
  $region1: #{lora_vit_forward.1} parent=0
    #allocation2 [shape = 'u8[1024]{0}', space=vmem, size = 0x400, scoped, tag = 'output window, operand 0']
    #allocation3 [shape = 's32[2]{0}', space=sflag, size = 0x8, scoped, tag = 'scoped memory for lora_vit_forward.1']
    %26 = vsyncpa [#allocation3], 0
    %s27 = scalar_lea.sflag [#allocation3], 1
    %28 = vsyncpa %s27, 0
    loop: start=0, step=1, limit=4
    $region2: #{lora_vit_forward.1} parent=1 // loop_pre_header
      _
    $region3: #{lora_vit_forward.1} parent=1 // loop_header
      %s30 = sphi 0, %s34
      %p31 = scmp.ge.s32.totalorder %s30, 4
      %s40 = sphi 0, %s42
      %s43 = sphi 0, %s40
      %s44 = sphi 0, %s43
      %s60 = sphi 0, %s44
      %s64 = sphi 0, %s64
      %s66 = sphi 0, %s64
      %s67 = sphi 0, %s66
      %s81 = sphi 0, %s67
      %s85 = sphi 0, %s85
      %s87 = sphi 0, %s85
      %s88 = sphi 0, %s87
      %s102 = sphi 0, %s88
      %s106 = sphi 0, %s106
      %s108 = sphi 0, %s106
      %s109 = sphi 0, %s108
      %s123 = sphi 0, %s109
      %s127 = sphi 0, %s127
      %s129 = sphi 0, %s127
      %s130 = sphi 0, %s129
      %s144 = sphi 0, %s130
      %s148 = sphi 0, %s148
      %s150 = sphi 0, %s148
      %s151 = sphi 0, %s150
      %s165 = sphi 0, %s151
      %s169 = sphi 0, %s169
      %s171 = sphi 0, %s169
      %s172 = sphi 0, %s171
      %s186 = sphi 0, %s172
      %s190 = sphi 0, %s190
      %s192 = sphi 0, %s190
      %s193 = sphi 0, %s192
      %s207 = sphi 0, %s193
      %s211 = sphi 0, %s211
      %s213 = sphi 0, %s211
      %s214 = sphi 0, %s213
      %s228 = sphi 0, %s214
      %s232 = sphi 0, %s232
      %s234 = sphi 0, %s232
      %s235 = sphi 0, %s234
      %s249 = sphi 0, %s235
      %s253 = sphi 0, %s253
      %s255 = sphi 0, %s253
      %s256 = sphi 0, %s255
      %s270 = sphi 0, %s256
      %s274 = sphi 0, %s274
      %s276 = sphi 0, %s274
      %s277 = sphi 0, %s276
      %s291 = sphi 0, %s277
      %s295 = sphi 0, %s295
      %s297 = sphi 0, %s295
      %s298 = sphi 0, %s297
      %s312 = sphi 0, %s298
      %s316 = sphi 0, %s316
      %s318 = sphi 0, %s316
      %s319 = sphi 0, %s318
      %s333 = sphi 0, %s319
      %s337 = sphi 0, %s337
      %s339 = sphi 0, %s337
      %s340 = sphi 0, %s339
      %s354 = sphi 0, %s340
      %s358 = sphi 0, %s358
      %s360 = sphi 0, %s358
      %s361 = sphi 0, %s360
      %s375 = sphi 0, %s361
      %s379 = sphi 0, %s379
      %s381 = sphi 0, %s379
      %s382 = sphi 0, %s381
      %s396 = sphi 0, %s382
      %s400 = sphi 0, %s400
      %s402 = sphi 0, %s400
      %s403 = sphi 0, %s402
      %s417 = sphi 0, %s403
      %s421 = sphi 0, %s421
      %s423 = sphi 0, %s421
      %s424 = sphi 0, %s423
      %s438 = sphi 0, %s424
      %s442 = sphi 0, %s442
      %s444 = sphi 0, %s442
      %s445 = sphi 0, %s444
      %s459 = sphi 0, %s445
      %s463 = sphi 0, %s463
      %s465 = sphi 0, %s463
      %s466 = sphi 0, %s465
      %s480 = sphi 0, %s466
      %s486 = sphi 0, %s488
      %s489 = sphi 0, %s486
      %s490 = sphi 0, %s489
      %s506 = sphi 0, %s490
    $region4: #{lora_vit_forward.1} parent=1 // loop_header_branch
      %33 = sbr.rel (%p31) target = $region8
    $region5: #{lora_vit_forward.1} parent=1 // loop_body
      %s35 = ssub.s32 %s30, 1
      %s36 = ssub.s32 %s30, 2
      %s37 = sadd.s32 %s30, 1
      %s38 = ssub.s32 %s30, %s37
      %p39 = scmp.eq.s32.totalorder %s38, 0
      %s41 = sadd.s32 %s40, 1
      %s42 = scalar_select %p39, %s40, %s41
      %p45 = pneg %p39
      %p46 = scmp.eq.s32.totalorder %s30, 1
      %p47 = por %p45, %p46
      %p48 = scmp.ne.s32.totalorder %s40, %s43
      %p49 = scmp.eq.s32.totalorder %s30, 0
      %p50 = por %p48, %p49
      %p51 = scmp.ne.s32.totalorder %s40, %s43
      %p52 = scmp.eq.s32.totalorder %s35, 1
      %p53 = por %p51, %p52
      %p54 = scmp.ne.s32.totalorder %s43, %s44
      %p55 = scmp.eq.s32.totalorder %s35, 0
      %p56 = por %p54, %p55
      %p57 = scmp.ne.s32.totalorder %s43, %s44
      %p58 = scmp.eq.s32.totalorder %s36, 1
      %p59 = por %p57, %p58
      %p61 = scmp.ne.s32.totalorder %s44, %s60
      %p62 = scmp.eq.s32.totalorder %s36, 0
      %p63 = por %p61, %p62
      %s65 = sadd.s32 %s64, 1
      %p68 = scmp.eq.s32.totalorder %s30, 1
      %p69 = scmp.ne.s32.totalorder %s64, %s66
      %p70 = scmp.eq.s32.totalorder %s30, 0
      %p71 = por %p69, %p70
      %p72 = scmp.ne.s32.totalorder %s64, %s66
      %p73 = scmp.eq.s32.totalorder %s35, 1
      %p74 = por %p72, %p73
      %p75 = scmp.ne.s32.totalorder %s66, %s67
      %p76 = scmp.eq.s32.totalorder %s35, 0
      %p77 = por %p75, %p76
      %p78 = scmp.ne.s32.totalorder %s66, %s67
      %p79 = scmp.eq.s32.totalorder %s36, 1
      %p80 = por %p78, %p79
      %p82 = scmp.ne.s32.totalorder %s67, %s81
      %p83 = scmp.eq.s32.totalorder %s36, 0
      %p84 = por %p82, %p83
      %s86 = sadd.s32 %s85, 1
      %p89 = scmp.eq.s32.totalorder %s30, 1
      %p90 = scmp.ne.s32.totalorder %s85, %s87
      %p91 = scmp.eq.s32.totalorder %s30, 0
      %p92 = por %p90, %p91
      %p93 = scmp.ne.s32.totalorder %s85, %s87
      %p94 = scmp.eq.s32.totalorder %s35, 1
      %p95 = por %p93, %p94
      %p96 = scmp.ne.s32.totalorder %s87, %s88
      %p97 = scmp.eq.s32.totalorder %s35, 0
      %p98 = por %p96, %p97
      %p99 = scmp.ne.s32.totalorder %s87, %s88
      %p100 = scmp.eq.s32.totalorder %s36, 1
      %p101 = por %p99, %p100
      %p103 = scmp.ne.s32.totalorder %s88, %s102
      %p104 = scmp.eq.s32.totalorder %s36, 0
      %p105 = por %p103, %p104
      %s107 = sadd.s32 %s106, 1
      %p110 = scmp.eq.s32.totalorder %s30, 1
      %p111 = scmp.ne.s32.totalorder %s106, %s108
      %p112 = scmp.eq.s32.totalorder %s30, 0
      %p113 = por %p111, %p112
      %p114 = scmp.ne.s32.totalorder %s106, %s108
      %p115 = scmp.eq.s32.totalorder %s35, 1
      %p116 = por %p114, %p115
      %p117 = scmp.ne.s32.totalorder %s108, %s109
      %p118 = scmp.eq.s32.totalorder %s35, 0
      %p119 = por %p117, %p118
      %p120 = scmp.ne.s32.totalorder %s108, %s109
      %p121 = scmp.eq.s32.totalorder %s36, 1
      %p122 = por %p120, %p121
      %p124 = scmp.ne.s32.totalorder %s109, %s123
      %p125 = scmp.eq.s32.totalorder %s36, 0
      %p126 = por %p124, %p125
      %s128 = sadd.s32 %s127, 1
      %p131 = scmp.eq.s32.totalorder %s30, 1
      %p132 = scmp.ne.s32.totalorder %s127, %s129
      %p133 = scmp.eq.s32.totalorder %s30, 0
      %p134 = por %p132, %p133
      %p135 = scmp.ne.s32.totalorder %s127, %s129
      %p136 = scmp.eq.s32.totalorder %s35, 1
      %p137 = por %p135, %p136
      %p138 = scmp.ne.s32.totalorder %s129, %s130
      %p139 = scmp.eq.s32.totalorder %s35, 0
      %p140 = por %p138, %p139
      %p141 = scmp.ne.s32.totalorder %s129, %s130
      %p142 = scmp.eq.s32.totalorder %s36, 1
      %p143 = por %p141, %p142
      %p145 = scmp.ne.s32.totalorder %s130, %s144
      %p146 = scmp.eq.s32.totalorder %s36, 0
      %p147 = por %p145, %p146
      %s149 = sadd.s32 %s148, 1
      %p152 = scmp.eq.s32.totalorder %s30, 1
      %p153 = scmp.ne.s32.totalorder %s148, %s150
      %p154 = scmp.eq.s32.totalorder %s30, 0
      %p155 = por %p153, %p154
      %p156 = scmp.ne.s32.totalorder %s148, %s150
      %p157 = scmp.eq.s32.totalorder %s35, 1
      %p158 = por %p156, %p157
      %p159 = scmp.ne.s32.totalorder %s150, %s151
      %p160 = scmp.eq.s32.totalorder %s35, 0
      %p161 = por %p159, %p160
      %p162 = scmp.ne.s32.totalorder %s150, %s151
      %p163 = scmp.eq.s32.totalorder %s36, 1
      %p164 = por %p162, %p163
      %p166 = scmp.ne.s32.totalorder %s151, %s165
      %p167 = scmp.eq.s32.totalorder %s36, 0
      %p168 = por %p166, %p167
      %s170 = sadd.s32 %s169, 1
      %p173 = scmp.eq.s32.totalorder %s30, 1
      %p174 = scmp.ne.s32.totalorder %s169, %s171
      %p175 = scmp.eq.s32.totalorder %s30, 0
      %p176 = por %p174, %p175
      %p177 = scmp.ne.s32.totalorder %s169, %s171
      %p178 = scmp.eq.s32.totalorder %s35, 1
      %p179 = por %p177, %p178
      %p180 = scmp.ne.s32.totalorder %s171, %s172
      %p181 = scmp.eq.s32.totalorder %s35, 0
      %p182 = por %p180, %p181
      %p183 = scmp.ne.s32.totalorder %s171, %s172
      %p184 = scmp.eq.s32.totalorder %s36, 1
      %p185 = por %p183, %p184
      %p187 = scmp.ne.s32.totalorder %s172, %s186
      %p188 = scmp.eq.s32.totalorder %s36, 0
      %p189 = por %p187, %p188
      %s191 = sadd.s32 %s190, 1
      %p194 = scmp.eq.s32.totalorder %s30, 1
      %p195 = scmp.ne.s32.totalorder %s190, %s192
      %p196 = scmp.eq.s32.totalorder %s30, 0
      %p197 = por %p195, %p196
      %p198 = scmp.ne.s32.totalorder %s190, %s192
      %p199 = scmp.eq.s32.totalorder %s35, 1
      %p200 = por %p198, %p199
      %p201 = scmp.ne.s32.totalorder %s192, %s193
      %p202 = scmp.eq.s32.totalorder %s35, 0
      %p203 = por %p201, %p202
      %p204 = scmp.ne.s32.totalorder %s192, %s193
      %p205 = scmp.eq.s32.totalorder %s36, 1
      %p206 = por %p204, %p205
      %p208 = scmp.ne.s32.totalorder %s193, %s207
      %p209 = scmp.eq.s32.totalorder %s36, 0
      %p210 = por %p208, %p209
      %s212 = sadd.s32 %s211, 1
      %p215 = scmp.eq.s32.totalorder %s30, 1
      %p216 = scmp.ne.s32.totalorder %s211, %s213
      %p217 = scmp.eq.s32.totalorder %s30, 0
      %p218 = por %p216, %p217
      %p219 = scmp.ne.s32.totalorder %s211, %s213
      %p220 = scmp.eq.s32.totalorder %s35, 1
      %p221 = por %p219, %p220
      %p222 = scmp.ne.s32.totalorder %s213, %s214
      %p223 = scmp.eq.s32.totalorder %s35, 0
      %p224 = por %p222, %p223
      %p225 = scmp.ne.s32.totalorder %s213, %s214
      %p226 = scmp.eq.s32.totalorder %s36, 1
      %p227 = por %p225, %p226
      %p229 = scmp.ne.s32.totalorder %s214, %s228
      %p230 = scmp.eq.s32.totalorder %s36, 0
      %p231 = por %p229, %p230
      %s233 = sadd.s32 %s232, 1
      %p236 = scmp.eq.s32.totalorder %s30, 1
      %p237 = scmp.ne.s32.totalorder %s232, %s234
      %p238 = scmp.eq.s32.totalorder %s30, 0
      %p239 = por %p237, %p238
      %p240 = scmp.ne.s32.totalorder %s232, %s234
      %p241 = scmp.eq.s32.totalorder %s35, 1
      %p242 = por %p240, %p241
      %p243 = scmp.ne.s32.totalorder %s234, %s235
      %p244 = scmp.eq.s32.totalorder %s35, 0
      %p245 = por %p243, %p244
      %p246 = scmp.ne.s32.totalorder %s234, %s235
      %p247 = scmp.eq.s32.totalorder %s36, 1
      %p248 = por %p246, %p247
      %p250 = scmp.ne.s32.totalorder %s235, %s249
      %p251 = scmp.eq.s32.totalorder %s36, 0
      %p252 = por %p250, %p251
      %s254 = sadd.s32 %s253, 1
      %p257 = scmp.eq.s32.totalorder %s30, 1
      %p258 = scmp.ne.s32.totalorder %s253, %s255
      %p259 = scmp.eq.s32.totalorder %s30, 0
      %p260 = por %p258, %p259
      %p261 = scmp.ne.s32.totalorder %s253, %s255
      %p262 = scmp.eq.s32.totalorder %s35, 1
      %p263 = por %p261, %p262
      %p264 = scmp.ne.s32.totalorder %s255, %s256
      %p265 = scmp.eq.s32.totalorder %s35, 0
      %p266 = por %p264, %p265
      %p267 = scmp.ne.s32.totalorder %s255, %s256
      %p268 = scmp.eq.s32.totalorder %s36, 1
      %p269 = por %p267, %p268
      %p271 = scmp.ne.s32.totalorder %s256, %s270
      %p272 = scmp.eq.s32.totalorder %s36, 0
      %p273 = por %p271, %p272
      %s275 = sadd.s32 %s274, 1
      %p278 = scmp.eq.s32.totalorder %s30, 1
      %p279 = scmp.ne.s32.totalorder %s274, %s276
      %p280 = scmp.eq.s32.totalorder %s30, 0
      %p281 = por %p279, %p280
      %p282 = scmp.ne.s32.totalorder %s274, %s276
      %p283 = scmp.eq.s32.totalorder %s35, 1
      %p284 = por %p282, %p283
      %p285 = scmp.ne.s32.totalorder %s276, %s277
      %p286 = scmp.eq.s32.totalorder %s35, 0
      %p287 = por %p285, %p286
      %p288 = scmp.ne.s32.totalorder %s276, %s277
      %p289 = scmp.eq.s32.totalorder %s36, 1
      %p290 = por %p288, %p289
      %p292 = scmp.ne.s32.totalorder %s277, %s291
      %p293 = scmp.eq.s32.totalorder %s36, 0
      %p294 = por %p292, %p293
      %s296 = sadd.s32 %s295, 1
      %p299 = scmp.eq.s32.totalorder %s30, 1
      %p300 = scmp.ne.s32.totalorder %s295, %s297
      %p301 = scmp.eq.s32.totalorder %s30, 0
      %p302 = por %p300, %p301
      %p303 = scmp.ne.s32.totalorder %s295, %s297
      %p304 = scmp.eq.s32.totalorder %s35, 1
      %p305 = por %p303, %p304
      %p306 = scmp.ne.s32.totalorder %s297, %s298
      %p307 = scmp.eq.s32.totalorder %s35, 0
      %p308 = por %p306, %p307
      %p309 = scmp.ne.s32.totalorder %s297, %s298
      %p310 = scmp.eq.s32.totalorder %s36, 1
      %p311 = por %p309, %p310
      %p313 = scmp.ne.s32.totalorder %s298, %s312
      %p314 = scmp.eq.s32.totalorder %s36, 0
      %p315 = por %p313, %p314
      %s317 = sadd.s32 %s316, 1
      %p320 = scmp.eq.s32.totalorder %s30, 1
      %p321 = scmp.ne.s32.totalorder %s316, %s318
      %p322 = scmp.eq.s32.totalorder %s30, 0
      %p323 = por %p321, %p322
      %p324 = scmp.ne.s32.totalorder %s316, %s318
      %p325 = scmp.eq.s32.totalorder %s35, 1
      %p326 = por %p324, %p325
      %p327 = scmp.ne.s32.totalorder %s318, %s319
      %p328 = scmp.eq.s32.totalorder %s35, 0
      %p329 = por %p327, %p328
      %p330 = scmp.ne.s32.totalorder %s318, %s319
      %p331 = scmp.eq.s32.totalorder %s36, 1
      %p332 = por %p330, %p331
      %p334 = scmp.ne.s32.totalorder %s319, %s333
      %p335 = scmp.eq.s32.totalorder %s36, 0
      %p336 = por %p334, %p335
      %s338 = sadd.s32 %s337, 1
      %p341 = scmp.eq.s32.totalorder %s30, 1
      %p342 = scmp.ne.s32.totalorder %s337, %s339
      %p343 = scmp.eq.s32.totalorder %s30, 0
      %p344 = por %p342, %p343
      %p345 = scmp.ne.s32.totalorder %s337, %s339
      %p346 = scmp.eq.s32.totalorder %s35, 1
      %p347 = por %p345, %p346
      %p348 = scmp.ne.s32.totalorder %s339, %s340
      %p349 = scmp.eq.s32.totalorder %s35, 0
      %p350 = por %p348, %p349
      %p351 = scmp.ne.s32.totalorder %s339, %s340
      %p352 = scmp.eq.s32.totalorder %s36, 1
      %p353 = por %p351, %p352
      %p355 = scmp.ne.s32.totalorder %s340, %s354
      %p356 = scmp.eq.s32.totalorder %s36, 0
      %p357 = por %p355, %p356
      %s359 = sadd.s32 %s358, 1
      %p362 = scmp.eq.s32.totalorder %s30, 1
      %p363 = scmp.ne.s32.totalorder %s358, %s360
      %p364 = scmp.eq.s32.totalorder %s30, 0
      %p365 = por %p363, %p364
      %p366 = scmp.ne.s32.totalorder %s358, %s360
      %p367 = scmp.eq.s32.totalorder %s35, 1
      %p368 = por %p366, %p367
      %p369 = scmp.ne.s32.totalorder %s360, %s361
      %p370 = scmp.eq.s32.totalorder %s35, 0
      %p371 = por %p369, %p370
      %p372 = scmp.ne.s32.totalorder %s360, %s361
      %p373 = scmp.eq.s32.totalorder %s36, 1
      %p374 = por %p372, %p373
      %p376 = scmp.ne.s32.totalorder %s361, %s375
      %p377 = scmp.eq.s32.totalorder %s36, 0
      %p378 = por %p376, %p377
      %s380 = sadd.s32 %s379, 1
      %p383 = scmp.eq.s32.totalorder %s30, 1
      %p384 = scmp.ne.s32.totalorder %s379, %s381
      %p385 = scmp.eq.s32.totalorder %s30, 0
      %p386 = por %p384, %p385
      %p387 = scmp.ne.s32.totalorder %s379, %s381
      %p388 = scmp.eq.s32.totalorder %s35, 1
      %p389 = por %p387, %p388
      %p390 = scmp.ne.s32.totalorder %s381, %s382
      %p391 = scmp.eq.s32.totalorder %s35, 0
      %p392 = por %p390, %p391
      %p393 = scmp.ne.s32.totalorder %s381, %s382
      %p394 = scmp.eq.s32.totalorder %s36, 1
      %p395 = por %p393, %p394
      %p397 = scmp.ne.s32.totalorder %s382, %s396
      %p398 = scmp.eq.s32.totalorder %s36, 0
      %p399 = por %p397, %p398
      %s401 = sadd.s32 %s400, 1
      %p404 = scmp.eq.s32.totalorder %s30, 1
      %p405 = scmp.ne.s32.totalorder %s400, %s402
      %p406 = scmp.eq.s32.totalorder %s30, 0
      %p407 = por %p405, %p406
      %p408 = scmp.ne.s32.totalorder %s400, %s402
      %p409 = scmp.eq.s32.totalorder %s35, 1
      %p410 = por %p408, %p409
      %p411 = scmp.ne.s32.totalorder %s402, %s403
      %p412 = scmp.eq.s32.totalorder %s35, 0
      %p413 = por %p411, %p412
      %p414 = scmp.ne.s32.totalorder %s402, %s403
      %p415 = scmp.eq.s32.totalorder %s36, 1
      %p416 = por %p414, %p415
      %p418 = scmp.ne.s32.totalorder %s403, %s417
      %p419 = scmp.eq.s32.totalorder %s36, 0
      %p420 = por %p418, %p419
      %s422 = sadd.s32 %s421, 1
      %p425 = scmp.eq.s32.totalorder %s30, 1
      %p426 = scmp.ne.s32.totalorder %s421, %s423
      %p427 = scmp.eq.s32.totalorder %s30, 0
      %p428 = por %p426, %p427
      %p429 = scmp.ne.s32.totalorder %s421, %s423
      %p430 = scmp.eq.s32.totalorder %s35, 1
      %p431 = por %p429, %p430
      %p432 = scmp.ne.s32.totalorder %s423, %s424
      %p433 = scmp.eq.s32.totalorder %s35, 0
      %p434 = por %p432, %p433
      %p435 = scmp.ne.s32.totalorder %s423, %s424
      %p436 = scmp.eq.s32.totalorder %s36, 1
      %p437 = por %p435, %p436
      %p439 = scmp.ne.s32.totalorder %s424, %s438
      %p440 = scmp.eq.s32.totalorder %s36, 0
      %p441 = por %p439, %p440
      %s443 = sadd.s32 %s442, 1
      %p446 = scmp.eq.s32.totalorder %s30, 1
      %p447 = scmp.ne.s32.totalorder %s442, %s444
      %p448 = scmp.eq.s32.totalorder %s30, 0
      %p449 = por %p447, %p448
      %p450 = scmp.ne.s32.totalorder %s442, %s444
      %p451 = scmp.eq.s32.totalorder %s35, 1
      %p452 = por %p450, %p451
      %p453 = scmp.ne.s32.totalorder %s444, %s445
      %p454 = scmp.eq.s32.totalorder %s35, 0
      %p455 = por %p453, %p454
      %p456 = scmp.ne.s32.totalorder %s444, %s445
      %p457 = scmp.eq.s32.totalorder %s36, 1
      %p458 = por %p456, %p457
      %p460 = scmp.ne.s32.totalorder %s445, %s459
      %p461 = scmp.eq.s32.totalorder %s36, 0
      %p462 = por %p460, %p461
      %s464 = sadd.s32 %s463, 1
      %p467 = scmp.eq.s32.totalorder %s30, 1
      %p468 = scmp.ne.s32.totalorder %s463, %s465
      %p469 = scmp.eq.s32.totalorder %s30, 0
      %p470 = por %p468, %p469
      %p471 = scmp.ne.s32.totalorder %s463, %s465
      %p472 = scmp.eq.s32.totalorder %s35, 1
      %p473 = por %p471, %p472
      %p474 = scmp.ne.s32.totalorder %s465, %s466
      %p475 = scmp.eq.s32.totalorder %s35, 0
      %p476 = por %p474, %p475
      %p477 = scmp.ne.s32.totalorder %s465, %s466
      %p478 = scmp.eq.s32.totalorder %s36, 1
      %p479 = por %p477, %p478
      %p481 = scmp.ne.s32.totalorder %s466, %s480
      %p482 = scmp.eq.s32.totalorder %s36, 0
      %p483 = por %p481, %p482
      %s484 = ssub.s32 %s30, %s37
      %p485 = scmp.eq.s32.totalorder %s484, 0
      %s487 = sadd.s32 %s486, 1
      %s488 = scalar_select %p485, %s486, %s487
      %p491 = pneg %p485
      %p492 = scmp.eq.s32.totalorder %s30, 1
      %p493 = por %p491, %p492
      %p494 = scmp.ne.s32.totalorder %s486, %s489
      %p495 = scmp.eq.s32.totalorder %s30, 0
      %p496 = por %p494, %p495
      %p497 = scmp.ne.s32.totalorder %s486, %s489
      %p498 = scmp.eq.s32.totalorder %s35, 1
      %p499 = por %p497, %p498
      %p500 = scmp.ne.s32.totalorder %s489, %s490
      %p501 = scmp.eq.s32.totalorder %s35, 0
      %p502 = por %p500, %p501
      %p503 = scmp.ne.s32.totalorder %s489, %s490
      %p504 = scmp.eq.s32.totalorder %s36, 1
      %p505 = por %p503, %p504
      %p507 = scmp.ne.s32.totalorder %s490, %s506
      %p508 = scmp.eq.s32.totalorder %s36, 0
      %p509 = por %p507, %p508
      %p510 = scmp.le.s32.totalorder 1, %s30
      %p511 = scmp.lt.s32.totalorder %s30, 3
      %p512 = pnand %p510, %p511
      %p513 = pneg %p512
      // Predicated region
      $region9: #{lora_vit_forward.1} parent=5 // pred_check
        _
      $region10: #{lora_vit_forward.1} parent=5 // pred_check_branch
        %515 = sbr.rel (%p512) target = $region12
      $region11: #{lora_vit_forward.1} parent=5 // pred_region
        %s516 = ssub.s32 %s30, 1
        // Predicated region
        $region13: #{lora_vit_forward.1} parent=11 // pred_check
          %p517 = pneg %p77
        $region14: #{lora_vit_forward.1} parent=11 // pred_check_branch
          %519 = sbr.rel (%p517) target = $region16
        $region15: #{lora_vit_forward.1} parent=11 // pred_region
          _
        $region16: #{lora_vit_forward.1} parent=11 // pred_fallthru
          _
        // Predicated region
        $region17: #{lora_vit_forward.1} parent=11 // pred_check
          %p520 = pneg %p98
        $region18: #{lora_vit_forward.1} parent=11 // pred_check_branch
          %522 = sbr.rel (%p520) target = $region20
        $region19: #{lora_vit_forward.1} parent=11 // pred_region
          _
        $region20: #{lora_vit_forward.1} parent=11 // pred_fallthru
          _
        // Predicated region
        $region21: #{lora_vit_forward.1} parent=11 // pred_check
          %p523 = pneg %p119
        $region22: #{lora_vit_forward.1} parent=11 // pred_check_branch
          %525 = sbr.rel (%p523) target = $region24
        $region23: #{lora_vit_forward.1} parent=11 // pred_region
          _
        $region24: #{lora_vit_forward.1} parent=11 // pred_fallthru
          _
        // Predicated region
        $region25: #{lora_vit_forward.1} parent=11 // pred_check
          %p526 = pneg %p140
        $region26: #{lora_vit_forward.1} parent=11 // pred_check_branch
          %528 = sbr.rel (%p526) target = $region28
        $region27: #{lora_vit_forward.1} parent=11 // pred_region
          _
        $region28: #{lora_vit_forward.1} parent=11 // pred_fallthru
          _
        // Predicated region
        $region29: #{lora_vit_forward.1} parent=11 // pred_check
          %p529 = pneg %p161
        $region30: #{lora_vit_forward.1} parent=11 // pred_check_branch
          %531 = sbr.rel (%p529) target = $region32
        $region31: #{lora_vit_forward.1} parent=11 // pred_region
          _
        $region32: #{lora_vit_forward.1} parent=11 // pred_fallthru
          _
        // Predicated region
        $region33: #{lora_vit_forward.1} parent=11 // pred_check
          %p532 = pneg %p182
        $region34: #{lora_vit_forward.1} parent=11 // pred_check_branch
          %534 = sbr.rel (%p532) target = $region36
        $region35: #{lora_vit_forward.1} parent=11 // pred_region
          _
        $region36: #{lora_vit_forward.1} parent=11 // pred_fallthru
          _
        // Predicated region
        $region37: #{lora_vit_forward.1} parent=11 // pred_check
          %p535 = pneg %p203
        $region38: #{lora_vit_forward.1} parent=11 // pred_check_branch
          %537 = sbr.rel (%p535) target = $region40
        $region39: #{lora_vit_forward.1} parent=11 // pred_region
          _
        $region40: #{lora_vit_forward.1} parent=11 // pred_fallthru
          _
        // Predicated region
        $region41: #{lora_vit_forward.1} parent=11 // pred_check
          %p538 = pneg %p224
        $region42: #{lora_vit_forward.1} parent=11 // pred_check_branch
          %540 = sbr.rel (%p538) target = $region44
        $region43: #{lora_vit_forward.1} parent=11 // pred_region
          _
        $region44: #{lora_vit_forward.1} parent=11 // pred_fallthru
          _
        // Predicated region
        $region45: #{lora_vit_forward.1} parent=11 // pred_check
          %p541 = pneg %p245
        $region46: #{lora_vit_forward.1} parent=11 // pred_check_branch
          %543 = sbr.rel (%p541) target = $region48
        $region47: #{lora_vit_forward.1} parent=11 // pred_region
          _
        $region48: #{lora_vit_forward.1} parent=11 // pred_fallthru
          _
        // Predicated region
        $region49: #{lora_vit_forward.1} parent=11 // pred_check
          %p544 = pneg %p266
        $region50: #{lora_vit_forward.1} parent=11 // pred_check_branch
          %546 = sbr.rel (%p544) target = $region52
        $region51: #{lora_vit_forward.1} parent=11 // pred_region
          _
        $region52: #{lora_vit_forward.1} parent=11 // pred_fallthru
          _
        // Predicated region
        $region53: #{lora_vit_forward.1} parent=11 // pred_check
          %p547 = pneg %p287
        $region54: #{lora_vit_forward.1} parent=11 // pred_check_branch
          %549 = sbr.rel (%p547) target = $region56
        $region55: #{lora_vit_forward.1} parent=11 // pred_region
          _
        $region56: #{lora_vit_forward.1} parent=11 // pred_fallthru
          _
        // Predicated region
        $region57: #{lora_vit_forward.1} parent=11 // pred_check
          %p550 = pneg %p308
        $region58: #{lora_vit_forward.1} parent=11 // pred_check_branch
          %552 = sbr.rel (%p550) target = $region60
        $region59: #{lora_vit_forward.1} parent=11 // pred_region
          _
        $region60: #{lora_vit_forward.1} parent=11 // pred_fallthru
          _
        // Predicated region
        $region61: #{lora_vit_forward.1} parent=11 // pred_check
          %p553 = pneg %p329
        $region62: #{lora_vit_forward.1} parent=11 // pred_check_branch
          %555 = sbr.rel (%p553) target = $region64
        $region63: #{lora_vit_forward.1} parent=11 // pred_region
          _
        $region64: #{lora_vit_forward.1} parent=11 // pred_fallthru
          _
        // Predicated region
        $region65: #{lora_vit_forward.1} parent=11 // pred_check
          %p556 = pneg %p350
        $region66: #{lora_vit_forward.1} parent=11 // pred_check_branch
          %558 = sbr.rel (%p556) target = $region68
        $region67: #{lora_vit_forward.1} parent=11 // pred_region
          _
        $region68: #{lora_vit_forward.1} parent=11 // pred_fallthru
          _
        // Predicated region
        $region69: #{lora_vit_forward.1} parent=11 // pred_check
          %p559 = pneg %p371
        $region70: #{lora_vit_forward.1} parent=11 // pred_check_branch
          %561 = sbr.rel (%p559) target = $region72
        $region71: #{lora_vit_forward.1} parent=11 // pred_region
          _
        $region72: #{lora_vit_forward.1} parent=11 // pred_fallthru
          _
        // Predicated region
        $region73: #{lora_vit_forward.1} parent=11 // pred_check
          %p562 = pneg %p392
        $region74: #{lora_vit_forward.1} parent=11 // pred_check_branch
          %564 = sbr.rel (%p562) target = $region76
        $region75: #{lora_vit_forward.1} parent=11 // pred_region
          _
        $region76: #{lora_vit_forward.1} parent=11 // pred_fallthru
          _
        // Predicated region
        $region77: #{lora_vit_forward.1} parent=11 // pred_check
          %p565 = pneg %p413
        $region78: #{lora_vit_forward.1} parent=11 // pred_check_branch
          %567 = sbr.rel (%p565) target = $region80
        $region79: #{lora_vit_forward.1} parent=11 // pred_region
          _
        $region80: #{lora_vit_forward.1} parent=11 // pred_fallthru
          _
        // Predicated region
        $region81: #{lora_vit_forward.1} parent=11 // pred_check
          %p568 = pneg %p434
        $region82: #{lora_vit_forward.1} parent=11 // pred_check_branch
          %570 = sbr.rel (%p568) target = $region84
        $region83: #{lora_vit_forward.1} parent=11 // pred_region
          _
        $region84: #{lora_vit_forward.1} parent=11 // pred_fallthru
          _
        // Predicated region
        $region85: #{lora_vit_forward.1} parent=11 // pred_check
          %p571 = pneg %p455
        $region86: #{lora_vit_forward.1} parent=11 // pred_check_branch
          %573 = sbr.rel (%p571) target = $region88
        $region87: #{lora_vit_forward.1} parent=11 // pred_region
          _
        $region88: #{lora_vit_forward.1} parent=11 // pred_fallthru
          _
        // Predicated region
        $region89: #{lora_vit_forward.1} parent=11 // pred_check
          %p574 = pneg %p476
        $region90: #{lora_vit_forward.1} parent=11 // pred_check_branch
          %576 = sbr.rel (%p574) target = $region92
        $region91: #{lora_vit_forward.1} parent=11 // pred_region
          _
        $region92: #{lora_vit_forward.1} parent=11 // pred_fallthru
          _
      $region12: #{lora_vit_forward.1} parent=5 // pred_fallthru
        _
      %p577 = scmp.lt.s32.totalorder %s30, 2
      // Predicated region
      $region93: #{lora_vit_forward.1} parent=5 // pred_check
        %p578 = pneg %p577
      $region94: #{lora_vit_forward.1} parent=5 // pred_check_branch
        %580 = sbr.rel (%p578) target = $region96
      $region95: #{lora_vit_forward.1} parent=5 // pred_region
        // Predicated region
        $region97: #{lora_vit_forward.1} parent=95 // pred_check
          %p581 = pneg %p50
        $region98: #{lora_vit_forward.1} parent=95 // pred_check_branch
          %583 = sbr.rel (%p581) target = $region100
        $region99: #{lora_vit_forward.1} parent=95 // pred_region
          %p584 = scmp.lt.s32.totalorder %s30, 1
          %s585 = scalar_select %p584, %s30, 1
          %s586 = smul.addr %s585, 2
          %s587 = smul.addr %s586, 4
          %s588 = scalar_lea.vmem %s0, %s587
        $region100: #{lora_vit_forward.1} parent=95 // pred_fallthru
          _
      $region96: #{lora_vit_forward.1} parent=5 // pred_fallthru
        _
      %p589 = scmp.le.s32.totalorder 1, %s30
      %p590 = scmp.lt.s32.totalorder %s30, 3
      %p591 = pnand %p589, %p590
      %p592 = pneg %p591
      // Predicated region
      $region101: #{lora_vit_forward.1} parent=5 // pred_check
        _
      $region102: #{lora_vit_forward.1} parent=5 // pred_check_branch
        %594 = sbr.rel (%p591) target = $region104
      $region103: #{lora_vit_forward.1} parent=5 // pred_region
        %s595 = ssub.s32 %s30, 1
        %p596 = scmp.lt.s32.totalorder %s35, 1
        %s597 = scalar_select %p596, %s35, 1
        %s598 = smul.addr %s597, 2
        %s599 = smul.addr %s598, 4
        %s600 = scalar_lea.vmem %s0, %s599
        %p601 = pneg %p56
        %p602 = pneg %p53
        %p603 = pneg %p77
        %p604 = pneg %p74
        %p605 = pneg %p98
        %p606 = pneg %p95
        %p607 = pneg %p119
        %p608 = pneg %p116
        %p609 = pneg %p140
        %p610 = pneg %p137
        %p611 = pneg %p161
        %p612 = pneg %p158
        %p613 = pneg %p182
        %p614 = pneg %p179
        %p615 = pneg %p203
        %p616 = pneg %p200
        %p617 = pneg %p224
        %p618 = pneg %p221
        %p619 = pneg %p245
        %p620 = pneg %p242
        %p621 = pneg %p266
        %p622 = pneg %p263
        %p623 = pneg %p287
        %p624 = pneg %p284
        %p625 = pneg %p308
        %p626 = pneg %p305
        %p627 = pneg %p329
        %p628 = pneg %p326
        %p629 = pneg %p350
        %p630 = pneg %p347
        %p631 = pneg %p371
        %p632 = pneg %p368
        %p633 = pneg %p392
        %p634 = pneg %p389
        %p635 = pneg %p413
        %p636 = pneg %p410
        %p637 = pneg %p434
        %p638 = pneg %p431
        %p639 = pneg %p455
        %p640 = pneg %p452
        %p641 = pneg %p476
        %p642 = pneg %p473
        %p643 = pneg %p502
        %p644 = pneg %p499
        %s645 = sand.u32 %s489, 1
        %s646 = scalar_lea.sflag [#allocation3], %s645
        %s647 = sand.u32 %s489, 1
        %s648 = scalar_lea.vmem [#allocation2], %s647
        %p649 = scmp.lt.s32.totalorder %s35, 1
        %s650 = scalar_select %p649, %s35, 1
        %s651 = smul.addr %s650, 2
        %s652 = smul.addr %s651, 4
        %s653 = scalar_lea.vmem %s0, %s652
        %v654 = vld [vmem:[%s653] sm:$0xff]
        %v655 = vld [vmem:[%s1] sm:$0xff]
        %v656 = vld [vmem:[%s1 + $0x8] sm:$0xff]
        %v657 = vld [vmem:[%s1 + $0x10] sm:$0xff]
        %v658 = vld [vmem:[%s1 + $0x18] sm:$0xff]
        %v659 = vld [vmem:[%s1 + $0x20] sm:$0xff]
        %v660 = vld [vmem:[%s1 + $0x28] sm:$0xff]
        %v661 = vld [vmem:[%s1 + $0x30] sm:$0xff]
        %v662 = vld [vmem:[%s1 + $0x38] sm:$0xff]
        %v663 = vld [vmem:[%s1 + $0x40] sm:$0xff]
        %v664 = vld [vmem:[%s1 + $0x48] sm:$0xff]
        %v665 = vld [vmem:[%s1 + $0x50] sm:$0xff]
        %v666 = vld [vmem:[%s1 + $0x58] sm:$0xff]
        %v667 = vld [vmem:[%s1 + $0x60] sm:$0xff]
        %v668 = vld [vmem:[%s1 + $0x68] sm:$0xff]
        %v669 = vld [vmem:[%s1 + $0x70] sm:$0xff]
        %v670 = vld [vmem:[%s1 + $0x78] sm:$0xff]
        %v671 = vld [vmem:[%s1 + $0x80] sm:$0xff]
        %v672 = vld [vmem:[%s1 + $0x88] sm:$0xff]
        %v673 = vld [vmem:[%s1 + $0x90] sm:$0xff]
        %v674 = vld [vmem:[%s1 + $0x98] sm:$0xff]
        %v675 = vld [vmem:[%s1 + $0xa0] sm:$0xff]
        %v676 = vld [vmem:[%s1 + $0xa8] sm:$0xff]
        %v677 = vld [vmem:[%s1 + $0xb0] sm:$0xff]
        %v678 = vld [vmem:[%s1 + $0xb8] sm:$0xff]
        %v679 = vld [vmem:[%s2] sm:$0x1]
        %v681 = vperm.slane %v679, 0
        %684 = vst [vmem:[#allocation1] ss:$2 sm:$0xff] %v654
        %v685 = vld.sshfl [vmem:[#allocation1] sm:$0xff pattern:$0x75316420]
        %v686 = vld.sshfl [vmem:[#allocation1 + $0x8] sm:$0xff pattern:$0x75316420]
        %vm688 = vcmask 523264
        %v689 = vsel %vm688, %v686, 0
        %691 = vmatpush.msra.mxu0 %v670
        %692 = vmatpush.msra.mxu0 %v669
        %693 = vmatpush.msra.mxu0 %v668
        %694 = vmatpush.msra.mxu0 %v667
        %695 = vmatpush.msra.mxu0 %v666
        %696 = vmatpush.msra.mxu0 %v665
        %697 = vmatpush.msra.mxu0 %v664
        %698 = vmatpush.msra.mxu0 %v663
        %699 = vmatpush.msra.mxu0 %v662
        %700 = vmatpush.msra.mxu0 %v661
        %701 = vmatpush.msra.mxu0 %v660
        %702 = vmatpush.msra.mxu0 %v659
        %703 = vmatpush.msra.mxu0 %v658
        %704 = vmatpush.msra.mxu0 %v657
        %705 = vmatpush.msra.mxu0 %v656
        %706 = vmatpush.msra.mxu0 %v655
        %707 = vmatmul.f32.gmra.mxu0 %v685
        %v708 = vpop.f32.mrf.mxu0
        %v709 = vadd.f32 %v681, %v708
        %710 = vdwg.mxu0
        %711 = vmatpush.msra.mxu0 0.0
        %712 = vmatpush.msra.mxu0 0.0
        %713 = vmatpush.msra.mxu0 0.0
        %714 = vmatpush.msra.mxu0 0.0
        %715 = vmatpush.msra.mxu0 0.0
        %716 = vmatpush.msra.mxu0 0.0
        %717 = vmatpush.msra.mxu0 0.0
        %718 = vmatpush.msra.mxu0 0.0
        %719 = vmatpush.msra.mxu0 %v678
        %720 = vmatpush.msra.mxu0 %v677
        %721 = vmatpush.msra.mxu0 %v676
        %722 = vmatpush.msra.mxu0 %v675
        %723 = vmatpush.msra.mxu0 %v674
        %724 = vmatpush.msra.mxu0 %v673
        %725 = vmatpush.msra.mxu0 %v672
        %726 = vmatpush.msra.mxu0 %v671
        %727 = vmatmul.f32.gmra.mxu0 %v689
        %v728 = vpop.f32.mrf.mxu0
        %v729 = vadd.f32 %v709, %v728
        %730 = vdwg.mxu0
        %v731 = vld [vmem:[%s3] sm:$0x1]
        %v732 = vld [vmem:[%s4] sm:$0xf]
        %v733 = vadd.f32 %v729, %v732
        %v735 = vrot.slane %v733, 7
        %vm737 = vcmask 1040384
        %v738 = vsel %vm737, %v731, %v735
        %v739 = vld [vmem:[%s5] sm:$0x1]
        %v740 = vld [vmem:[%s6] sm:$0x1]
        %vm741 = vcmask 258048
        %v742 = vsel %vm741, %v738, 0.0
        %743 = vadd.xlane.f32.xlu0 %v742
        %v744 = vpop.xlane.xlu0 %743
        %v745 = vrcp.pop 32.0
        %v746 = vmul.f32 32.0, %v745
        %v747 = vsub.f32 1.0, %v746
        %v748 = vmul.f32 %v745, %v747
        %v749 = vadd.f32 %v745, %v748
        %vm750 = vweird.f32 %v745
        %v751 = vsel %vm750, %v745, %v749
        %v752 = vmul.f32 %v744, %v751
        %v753 = vsub.f32 %v738, %v752
        %v754 = vmul.f32 %v753, %v753
        %v755 = vsel %vm741, %v754, 0.0
        %756 = vadd.xlane.f32.xlu0 %v755
        %v757 = vpop.xlane.xlu0 %756
        %v758 = vmul.f32 %v757, %v751
        %v759 = vadd.f32 %v758, 1e-06
        %v760 = vrsqrt.pop %v759
        %v761 = vmul.f32 %v760, %v759
        %v762 = vmul.f32 %v761, %v760
        %v763 = vmul.f32 0.5, %v762
        %v764 = vsub.f32 1.5, %v763
        %v765 = vmul.f32 %v760, %v764
        %vm766 = vweird.f32 %v759
        %vm767 = vweird.f32 %v760
        %vm768 = vmor %vm766, %vm767
        %v769 = vsel %vm768, %v760, %v765
        %v770 = vmul.f32 %v753, %v769
        %v772 = vperm.slane %v739, 0
        %v774 = vmul.f32 %v770, %v772
        %v776 = vperm.slane %v740, 0
        %v778 = vadd.f32 %v774, %v776
        %v779 = vld [vmem:[%s7] sm:$0xff]
        %v780 = vld [vmem:[%s7 + $0x8] sm:$0xff]
        %v781 = vld [vmem:[%s7 + $0x10] sm:$0xff]
        %v782 = vld [vmem:[%s7 + $0x18] sm:$0xff]
        %v783 = vld [vmem:[%s8] sm:$0x1]
        %v785 = vperm.slane %v783, 0
        %vm787 = vcmask 261120
        %v789 = vsel %vm787, %v778, 0
        %791 = vmatpush.msra.mxu0 0.0
        %792 = vmatpush.msra.mxu0 0.0
        %793 = vmatpush.msra.mxu0 0.0
        %794 = vmatpush.msra.mxu0 0.0
        %795 = vmatpush.msra.mxu0 0.0
        %796 = vmatpush.msra.mxu0 0.0
        %797 = vmatpush.msra.mxu0 0.0
        %798 = vmatpush.msra.mxu0 0.0
        %799 = vmatpush.msra.mxu0 0.0
        %800 = vmatpush.msra.mxu0 0.0
        %801 = vmatpush.msra.mxu0 0.0
        %802 = vmatpush.msra.mxu0 0.0
        %803 = vmatpush.msra.mxu0 %v782
        %804 = vmatpush.msra.mxu0 %v781
        %805 = vmatpush.msra.mxu0 %v780
        %806 = vmatpush.msra.mxu0 %v779
        %807 = vmatmul.f32.gmra.mxu0 %v789
        %v808 = vpop.f32.mrf.mxu0
        %v809 = vadd.f32 %v785, %v808
        %810 = vdwg.mxu0
        %v811 = vmul.f32 %v809, 0.25
        %813 = vrot.lane.b32.xlu0 %v809, 96
        %v814 = vpop.permute.xlu0 %813
        %vm815 = vcmask 130048
        %v817 = vsel %vm815, %v811, 0
        %v819 = vsel %vm815, %v814, 0
        %821 = vmatpush.xpose.msra.mxu0 0.0
        %822 = vmatpush.xpose.msra.mxu0 0.0
        %823 = vmatpush.xpose.msra.mxu0 0.0
        %824 = vmatpush.xpose.msra.mxu0 0.0
        %825 = vmatpush.xpose.msra.mxu0 0.0
        %826 = vmatpush.xpose.msra.mxu0 0.0
        %827 = vmatpush.xpose.msra.mxu0 0.0
        %828 = vmatpush.xpose.msra.mxu0 0.0
        %829 = vmatpush.xpose.msra.mxu0 0.0
        %830 = vmatpush.xpose.msra.mxu0 0.0
        %831 = vmatpush.xpose.msra.mxu0 0.0
        %832 = vmatpush.xpose.msra.mxu0 0.0
        %833 = vmatpush.xpose.msra.mxu0 0.0
        %834 = vmatpush.xpose.msra.mxu0 0.0
        %835 = vmatpush.xpose.msra.mxu0 0.0
        %836 = vmatpush.xpose.msra.mxu0 %v819
        %837 = vmatmul.f32.gmra.mxu0 %v817
        %v838 = vpop.f32.mrf.mxu0
        %v839 = vadd.f32 0.0, %v838
        %840 = vdwg.mxu0
        %vm841 = vcmask 36864
        %v842 = vsel %vm841, %v839, -inf
        %843 = vmax.xlane.f32.xlu0 %v842
        %v844 = vpop.xlane.xlu0 %843
        %v845 = vsub.f32 %v839, %v844
        %v846 = vmul.f32 %v845, 1.442695
        %v847 = vpow.pop %v846
        %v848 = vsel %vm841, %v847, 0.0
        %849 = vadd.xlane.f32.xlu0 %v848
        %v850 = vpop.xlane.xlu0 %849
        %v851 = vrcp.pop %v850
        %v852 = vmul.f32 %v847, %v851
        %853 = vrot.lane.b32.xlu0 %v809, 64
        %v854 = vpop.permute.xlu0 %853
        %vm855 = vcmask 39936
        %v857 = vsel %vm855, %v852, 0
        %vm859 = vcmask 1044480
        %v860 = vsel %vm859, %v854, 0
        %862 = vmatpush.msra.mxu0 0.0
        %863 = vmatpush.msra.mxu0 0.0
        %864 = vmatpush.msra.mxu0 0.0
        %865 = vmatpush.msra.mxu0 0.0
        %866 = vmatpush.msra.mxu0 0.0
        %867 = vmatpush.msra.mxu0 0.0
        %868 = vmatpush.msra.mxu0 0.0
        %869 = vmatpush.msra.mxu0 0.0
        %870 = vmatpush.msra.mxu0 0.0
        %871 = vmatpush.msra.mxu0 0.0
        %872 = vmatpush.msra.mxu0 0.0
        %873 = vmatpush.msra.mxu0 0.0
        %874 = vmatpush.msra.mxu0 0.0
        %875 = vmatpush.msra.mxu0 0.0
        %876 = vmatpush.msra.mxu0 0.0
        %877 = vmatpush.msra.mxu0 %v860
        %878 = vmatmul.f32.gmra.mxu0 %v857
        %v879 = vpop.f32.mrf.mxu0
        %v880 = vadd.f32 0.0, %v879
        %881 = vdwg.mxu0
        %882 = vrot.lane.b32.xlu0 %v811, 112
        %v883 = vpop.permute.xlu0 %882
        %884 = vrot.lane.b32.xlu0 %v809, 80
        %v885 = vpop.permute.xlu0 %884
        %v886 = vsel %vm815, %v883, 0
        %v888 = vsel %vm815, %v885, 0
        %890 = vmatpush.xpose.msra.mxu0 0.0
        %891 = vmatpush.xpose.msra.mxu0 0.0
        %892 = vmatpush.xpose.msra.mxu0 0.0
        %893 = vmatpush.xpose.msra.mxu0 0.0
        %894 = vmatpush.xpose.msra.mxu0 0.0
        %895 = vmatpush.xpose.msra.mxu0 0.0
        %896 = vmatpush.xpose.msra.mxu0 0.0
        %897 = vmatpush.xpose.msra.mxu0 0.0
        %898 = vmatpush.xpose.msra.mxu0 0.0
        %899 = vmatpush.xpose.msra.mxu0 0.0
        %900 = vmatpush.xpose.msra.mxu0 0.0
        %901 = vmatpush.xpose.msra.mxu0 0.0
        %902 = vmatpush.xpose.msra.mxu0 0.0
        %903 = vmatpush.xpose.msra.mxu0 0.0
        %904 = vmatpush.xpose.msra.mxu0 0.0
        %905 = vmatpush.xpose.msra.mxu0 %v888
        %906 = vmatmul.f32.gmra.mxu0 %v886
        %v907 = vpop.f32.mrf.mxu0
        %v908 = vadd.f32 0.0, %v907
        %909 = vdwg.mxu0
        %v910 = vsel %vm841, %v908, -inf
        %911 = vmax.xlane.f32.xlu0 %v910
        %v912 = vpop.xlane.xlu0 %911
        %v913 = vsub.f32 %v908, %v912
        %v914 = vmul.f32 %v913, 1.442695
        %v915 = vpow.pop %v914
        %v916 = vsel %vm841, %v915, 0.0
        %917 = vadd.xlane.f32.xlu0 %v916
        %v918 = vpop.xlane.xlu0 %917
        %v919 = vrcp.pop %v918
        %v920 = vmul.f32 %v915, %v919
        %921 = vrot.lane.b32.xlu0 %v809, 48
        %v922 = vpop.permute.xlu0 %921
        %v924 = vsel %vm855, %v920, 0
        %v926 = vsel %vm859, %v922, 0
        %928 = vmatpush.msra.mxu0 0.0
        %929 = vmatpush.msra.mxu0 0.0
        %930 = vmatpush.msra.mxu0 0.0
        %931 = vmatpush.msra.mxu0 0.0
        %932 = vmatpush.msra.mxu0 0.0
        %933 = vmatpush.msra.mxu0 0.0
        %934 = vmatpush.msra.mxu0 0.0
        %935 = vmatpush.msra.mxu0 0.0
        %936 = vmatpush.msra.mxu0 0.0
        %937 = vmatpush.msra.mxu0 0.0
        %938 = vmatpush.msra.mxu0 0.0
        %939 = vmatpush.msra.mxu0 0.0
        %940 = vmatpush.msra.mxu0 0.0
        %941 = vmatpush.msra.mxu0 0.0
        %942 = vmatpush.msra.mxu0 0.0
        %943 = vmatpush.msra.mxu0 %v926
        %944 = vmatmul.f32.gmra.mxu0 %v924
        %v945 = vpop.f32.mrf.mxu0
        %v946 = vadd.f32 0.0, %v945
        %947 = vdwg.mxu0
        %949 = vrot.lane.b32.xlu0 %v946, 16
        %v950 = vpop.permute.xlu0 %949
        %v952 = vsel %vm815, %v880, %v950
        %v953 = vld [vmem:[%s9] sm:$0xff]
        %v954 = vld [vmem:[%s9 + $0x8] sm:$0xff]
        %v955 = vld [vmem:[%s9 + $0x10] sm:$0xff]
        %v956 = vld [vmem:[%s9 + $0x18] sm:$0xff]
        %v958 = vsel %vm787, %v952, 0
        %960 = vmatpush.msra.mxu0 0.0
        %961 = vmatpush.msra.mxu0 0.0
        %962 = vmatpush.msra.mxu0 0.0
        %963 = vmatpush.msra.mxu0 0.0
        %964 = vmatpush.msra.mxu0 0.0
        %965 = vmatpush.msra.mxu0 0.0
        %966 = vmatpush.msra.mxu0 0.0
        %967 = vmatpush.msra.mxu0 0.0
        %968 = vmatpush.msra.mxu0 0.0
        %969 = vmatpush.msra.mxu0 0.0
        %970 = vmatpush.msra.mxu0 0.0
        %971 = vmatpush.msra.mxu0 0.0
        %972 = vmatpush.msra.mxu0 %v956
        %973 = vmatpush.msra.mxu0 %v955
        %974 = vmatpush.msra.mxu0 %v954
        %975 = vmatpush.msra.mxu0 %v953
        %976 = vmatmul.f32.gmra.mxu0 %v958
        %v977 = vpop.f32.mrf.mxu0
        %v978 = vadd.f32 0.0, %v977
        %979 = vdwg.mxu0
        %v980 = vadd.f32 %v738, %v978
        %v981 = vld [vmem:[%s10] sm:$0x1]
        %v983 = vperm.slane %v981, 0
        %v985 = vadd.f32 %v980, %v983
        %v986 = vld [vmem:[%s11] sm:$0x1]
        %v987 = vld [vmem:[%s12] sm:$0x1]
        %v988 = vsel %vm741, %v985, 0.0
        %989 = vadd.xlane.f32.xlu0 %v988
        %v990 = vpop.xlane.xlu0 %989
        %v991 = vmul.f32 %v990, %v751
        %v992 = vsub.f32 %v985, %v991
        %v993 = vmul.f32 %v992, %v992
        %v994 = vsel %vm741, %v993, 0.0
        %995 = vadd.xlane.f32.xlu0 %v994
        %v996 = vpop.xlane.xlu0 %995
        %v997 = vmul.f32 %v996, %v751
        %v998 = vadd.f32 %v997, 1e-06
        %v999 = vrsqrt.pop %v998
        %v1000 = vmul.f32 %v999, %v998
        %v1001 = vmul.f32 %v1000, %v999
        %v1002 = vmul.f32 0.5, %v1001
        %v1003 = vsub.f32 1.5, %v1002
        %v1004 = vmul.f32 %v999, %v1003
        %vm1005 = vweird.f32 %v998
        %vm1006 = vweird.f32 %v999
        %vm1007 = vmor %vm1005, %vm1006
        %v1008 = vsel %vm1007, %v999, %v1004
        %v1009 = vmul.f32 %v992, %v1008
        %v1011 = vperm.slane %v986, 0
        %v1013 = vmul.f32 %v1009, %v1011
        %v1015 = vperm.slane %v987, 0
        %v1017 = vadd.f32 %v1013, %v1015
        %v1018 = vld [vmem:[%s13] sm:$0xff]
        %v1019 = vld [vmem:[%s13 + $0x8] sm:$0xff]
        %v1020 = vld [vmem:[%s13 + $0x10] sm:$0xff]
        %v1021 = vld [vmem:[%s13 + $0x18] sm:$0xff]
        %v1022 = vld [vmem:[%s14] sm:$0x1]
        %v1024 = vperm.slane %v1022, 0
        %v1027 = vsel %vm787, %v1017, 0
        %1029 = vmatpush.msra.mxu0 0.0
        %1030 = vmatpush.msra.mxu0 0.0
        %1031 = vmatpush.msra.mxu0 0.0
        %1032 = vmatpush.msra.mxu0 0.0
        %1033 = vmatpush.msra.mxu0 0.0
        %1034 = vmatpush.msra.mxu0 0.0
        %1035 = vmatpush.msra.mxu0 0.0
        %1036 = vmatpush.msra.mxu0 0.0
        %1037 = vmatpush.msra.mxu0 0.0
        %1038 = vmatpush.msra.mxu0 0.0
        %1039 = vmatpush.msra.mxu0 0.0
        %1040 = vmatpush.msra.mxu0 0.0
        %1041 = vmatpush.msra.mxu0 %v1021
        %1042 = vmatpush.msra.mxu0 %v1020
        %1043 = vmatpush.msra.mxu0 %v1019
        %1044 = vmatpush.msra.mxu0 %v1018
        %1045 = vmatmul.f32.gmra.mxu0 %v1027
        %v1046 = vpop.f32.mrf.mxu0
        %v1047 = vadd.f32 %v1024, %v1046
        %1048 = vdwg.mxu0
        %v1049 = vmul.f32 %v1047, %v1047
        %v1050 = vmul.f32 %v1047, %v1049
        %v1051 = vmul.f32 %v1050, 0.044715
        %v1052 = vadd.f32 %v1047, %v1051
        %v1053 = vmul.f32 %v1052, 0.7978846
        %v1054 = vtanh.pop %v1053
        %v1055 = vadd.f32 %v1054, 1.0
        %v1056 = vmul.f32 %v1055, 0.5
        %v1057 = vmul.f32 %v1047, %v1056
        %v1058 = vld [vmem:[%s15] sm:$0xff]
        %v1059 = vld [vmem:[%s15 + $0x8] sm:$0xff]
        %v1060 = vld [vmem:[%s15 + $0x10] sm:$0xff]
        %v1061 = vld [vmem:[%s15 + $0x18] sm:$0xff]
        %v1062 = vld [vmem:[%s15 + $0x20] sm:$0xff]
        %v1063 = vld [vmem:[%s15 + $0x28] sm:$0xff]
        %v1064 = vld [vmem:[%s15 + $0x30] sm:$0xff]
        %v1065 = vld [vmem:[%s15 + $0x38] sm:$0xff]
        %v1066 = vld [vmem:[%s15 + $0x40] sm:$0xff]
        %v1067 = vld [vmem:[%s15 + $0x48] sm:$0xff]
        %v1068 = vld [vmem:[%s15 + $0x50] sm:$0xff]
        %v1069 = vld [vmem:[%s15 + $0x58] sm:$0xff]
        %v1070 = vld [vmem:[%s15 + $0x60] sm:$0xff]
        %v1071 = vld [vmem:[%s15 + $0x68] sm:$0xff]
        %v1072 = vld [vmem:[%s15 + $0x70] sm:$0xff]
        %v1073 = vld [vmem:[%s15 + $0x78] sm:$0xff]
        %1074 = vmatpush.msra.mxu0 %v1073
        %1075 = vmatpush.msra.mxu0 %v1072
        %1076 = vmatpush.msra.mxu0 %v1071
        %1077 = vmatpush.msra.mxu0 %v1070
        %1078 = vmatpush.msra.mxu0 %v1069
        %1079 = vmatpush.msra.mxu0 %v1068
        %1080 = vmatpush.msra.mxu0 %v1067
        %1081 = vmatpush.msra.mxu0 %v1066
        %1082 = vmatpush.msra.mxu0 %v1065
        %1083 = vmatpush.msra.mxu0 %v1064
        %1084 = vmatpush.msra.mxu0 %v1063
        %1085 = vmatpush.msra.mxu0 %v1062
        %1086 = vmatpush.msra.mxu0 %v1061
        %1087 = vmatpush.msra.mxu0 %v1060
        %1088 = vmatpush.msra.mxu0 %v1059
        %1089 = vmatpush.msra.mxu0 %v1058
        %1090 = vmatmul.f32.gmra.mxu0 %v1057
        %v1091 = vpop.f32.mrf.mxu0
        %v1092 = vadd.f32 0.0, %v1091
        %1093 = vdwg.mxu0
        %v1094 = vadd.f32 %v985, %v1092
        %v1095 = vld [vmem:[%s16] sm:$0x1]
        %v1097 = vperm.slane %v1095, 0
        %v1099 = vadd.f32 %v1094, %v1097
        %s1100 = scalar_lea.vmem %s5, 1
        %v1101 = vld [vmem:[%s1100] sm:$0x1]
        %s1102 = scalar_lea.vmem %s6, 1
        %v1103 = vld [vmem:[%s1102] sm:$0x1]
        %v1104 = vsel %vm741, %v1099, 0.0
        %1105 = vadd.xlane.f32.xlu0 %v1104
        %v1106 = vpop.xlane.xlu0 %1105
        %v1107 = vmul.f32 %v1106, %v751
        %v1108 = vsub.f32 %v1099, %v1107
        %v1109 = vmul.f32 %v1108, %v1108
        %v1110 = vsel %vm741, %v1109, 0.0
        %1111 = vadd.xlane.f32.xlu0 %v1110
        %v1112 = vpop.xlane.xlu0 %1111
        %v1113 = vmul.f32 %v1112, %v751
        %v1114 = vadd.f32 %v1113, 1e-06
        %v1115 = vrsqrt.pop %v1114
        %v1116 = vmul.f32 %v1115, %v1114
        %v1117 = vmul.f32 %v1116, %v1115
        %v1118 = vmul.f32 0.5, %v1117
        %v1119 = vsub.f32 1.5, %v1118
        %v1120 = vmul.f32 %v1115, %v1119
        %vm1121 = vweird.f32 %v1114
        %vm1122 = vweird.f32 %v1115
        %vm1123 = vmor %vm1121, %vm1122
        %v1124 = vsel %vm1123, %v1115, %v1120
        %v1125 = vmul.f32 %v1108, %v1124
        %v1127 = vperm.slane %v1101, 0
        %v1129 = vmul.f32 %v1125, %v1127
        %v1131 = vperm.slane %v1103, 0
        %v1133 = vadd.f32 %v1129, %v1131
        %s1134 = scalar_lea.vmem %s7, 32
        %v1135 = vld [vmem:[%s1134] sm:$0xff]
        %v1136 = vld [vmem:[%s1134 + $0x8] sm:$0xff]
        %v1137 = vld [vmem:[%s1134 + $0x10] sm:$0xff]
        %v1138 = vld [vmem:[%s1134 + $0x18] sm:$0xff]
        %s1139 = scalar_lea.vmem %s8, 1
        %v1140 = vld [vmem:[%s1139] sm:$0x1]
        %v1142 = vperm.slane %v1140, 0
        %v1145 = vsel %vm787, %v1133, 0
        %1147 = vmatpush.msra.mxu0 0.0
        %1148 = vmatpush.msra.mxu0 0.0
        %1149 = vmatpush.msra.mxu0 0.0
        %1150 = vmatpush.msra.mxu0 0.0
        %1151 = vmatpush.msra.mxu0 0.0
        %1152 = vmatpush.msra.mxu0 0.0
        %1153 = vmatpush.msra.mxu0 0.0
        %1154 = vmatpush.msra.mxu0 0.0
        %1155 = vmatpush.msra.mxu0 0.0
        %1156 = vmatpush.msra.mxu0 0.0
        %1157 = vmatpush.msra.mxu0 0.0
        %1158 = vmatpush.msra.mxu0 0.0
        %1159 = vmatpush.msra.mxu0 %v1138
        %1160 = vmatpush.msra.mxu0 %v1137
        %1161 = vmatpush.msra.mxu0 %v1136
        %1162 = vmatpush.msra.mxu0 %v1135
        %1163 = vmatmul.f32.gmra.mxu0 %v1145
        %v1164 = vpop.f32.mrf.mxu0
        %v1165 = vadd.f32 %v1142, %v1164
        %1166 = vdwg.mxu0
        %v1167 = vmul.f32 %v1165, 0.25
        %1169 = vrot.lane.b32.xlu0 %v1165, 96
        %v1170 = vpop.permute.xlu0 %1169
        %v1172 = vsel %vm815, %v1167, 0
        %v1174 = vsel %vm815, %v1170, 0
        %1176 = vmatpush.xpose.msra.mxu0 0.0
        %1177 = vmatpush.xpose.msra.mxu0 0.0
        %1178 = vmatpush.xpose.msra.mxu0 0.0
        %1179 = vmatpush.xpose.msra.mxu0 0.0
        %1180 = vmatpush.xpose.msra.mxu0 0.0
        %1181 = vmatpush.xpose.msra.mxu0 0.0
        %1182 = vmatpush.xpose.msra.mxu0 0.0
        %1183 = vmatpush.xpose.msra.mxu0 0.0
        %1184 = vmatpush.xpose.msra.mxu0 0.0
        %1185 = vmatpush.xpose.msra.mxu0 0.0
        %1186 = vmatpush.xpose.msra.mxu0 0.0
        %1187 = vmatpush.xpose.msra.mxu0 0.0
        %1188 = vmatpush.xpose.msra.mxu0 0.0
        %1189 = vmatpush.xpose.msra.mxu0 0.0
        %1190 = vmatpush.xpose.msra.mxu0 0.0
        %1191 = vmatpush.xpose.msra.mxu0 %v1174
        %1192 = vmatmul.f32.gmra.mxu0 %v1172
        %v1193 = vpop.f32.mrf.mxu0
        %v1194 = vadd.f32 0.0, %v1193
        %1195 = vdwg.mxu0
        %v1196 = vsel %vm841, %v1194, -inf
        %1197 = vmax.xlane.f32.xlu0 %v1196
        %v1198 = vpop.xlane.xlu0 %1197
        %v1199 = vsub.f32 %v1194, %v1198
        %v1200 = vmul.f32 %v1199, 1.442695
        %v1201 = vpow.pop %v1200
        %v1202 = vsel %vm841, %v1201, 0.0
        %1203 = vadd.xlane.f32.xlu0 %v1202
        %v1204 = vpop.xlane.xlu0 %1203
        %v1205 = vrcp.pop %v1204
        %v1206 = vmul.f32 %v1201, %v1205
        %1207 = vrot.lane.b32.xlu0 %v1165, 64
        %v1208 = vpop.permute.xlu0 %1207
        %v1210 = vsel %vm855, %v1206, 0
        %v1212 = vsel %vm859, %v1208, 0
        %1214 = vmatpush.msra.mxu0 0.0
        %1215 = vmatpush.msra.mxu0 0.0
        %1216 = vmatpush.msra.mxu0 0.0
        %1217 = vmatpush.msra.mxu0 0.0
        %1218 = vmatpush.msra.mxu0 0.0
        %1219 = vmatpush.msra.mxu0 0.0
        %1220 = vmatpush.msra.mxu0 0.0
        %1221 = vmatpush.msra.mxu0 0.0
        %1222 = vmatpush.msra.mxu0 0.0
        %1223 = vmatpush.msra.mxu0 0.0
        %1224 = vmatpush.msra.mxu0 0.0
        %1225 = vmatpush.msra.mxu0 0.0
        %1226 = vmatpush.msra.mxu0 0.0
        %1227 = vmatpush.msra.mxu0 0.0
        %1228 = vmatpush.msra.mxu0 0.0
        %1229 = vmatpush.msra.mxu0 %v1212
        %1230 = vmatmul.f32.gmra.mxu0 %v1210
        %v1231 = vpop.f32.mrf.mxu0
        %v1232 = vadd.f32 0.0, %v1231
        %1233 = vdwg.mxu0
        %1234 = vrot.lane.b32.xlu0 %v1167, 112
        %v1235 = vpop.permute.xlu0 %1234
        %1236 = vrot.lane.b32.xlu0 %v1165, 80
        %v1237 = vpop.permute.xlu0 %1236
        %v1238 = vsel %vm815, %v1235, 0
        %v1240 = vsel %vm815, %v1237, 0
        %1242 = vmatpush.xpose.msra.mxu0 0.0
        %1243 = vmatpush.xpose.msra.mxu0 0.0
        %1244 = vmatpush.xpose.msra.mxu0 0.0
        %1245 = vmatpush.xpose.msra.mxu0 0.0
        %1246 = vmatpush.xpose.msra.mxu0 0.0
        %1247 = vmatpush.xpose.msra.mxu0 0.0
        %1248 = vmatpush.xpose.msra.mxu0 0.0
        %1249 = vmatpush.xpose.msra.mxu0 0.0
        %1250 = vmatpush.xpose.msra.mxu0 0.0
        %1251 = vmatpush.xpose.msra.mxu0 0.0
        %1252 = vmatpush.xpose.msra.mxu0 0.0
        %1253 = vmatpush.xpose.msra.mxu0 0.0
        %1254 = vmatpush.xpose.msra.mxu0 0.0
        %1255 = vmatpush.xpose.msra.mxu0 0.0
        %1256 = vmatpush.xpose.msra.mxu0 0.0
        %1257 = vmatpush.xpose.msra.mxu0 %v1240
        %1258 = vmatmul.f32.gmra.mxu0 %v1238
        %v1259 = vpop.f32.mrf.mxu0
        %v1260 = vadd.f32 0.0, %v1259
        %1261 = vdwg.mxu0
        %v1262 = vsel %vm841, %v1260, -inf
        %1263 = vmax.xlane.f32.xlu0 %v1262
        %v1264 = vpop.xlane.xlu0 %1263
        %v1265 = vsub.f32 %v1260, %v1264
        %v1266 = vmul.f32 %v1265, 1.442695
        %v1267 = vpow.pop %v1266
        %v1268 = vsel %vm841, %v1267, 0.0
        %1269 = vadd.xlane.f32.xlu0 %v1268
        %v1270 = vpop.xlane.xlu0 %1269
        %v1271 = vrcp.pop %v1270
        %v1272 = vmul.f32 %v1267, %v1271
        %1273 = vrot.lane.b32.xlu0 %v1165, 48
        %v1274 = vpop.permute.xlu0 %1273
        %v1276 = vsel %vm855, %v1272, 0
        %v1278 = vsel %vm859, %v1274, 0
        %1280 = vmatpush.msra.mxu0 0.0
        %1281 = vmatpush.msra.mxu0 0.0
        %1282 = vmatpush.msra.mxu0 0.0
        %1283 = vmatpush.msra.mxu0 0.0
        %1284 = vmatpush.msra.mxu0 0.0
        %1285 = vmatpush.msra.mxu0 0.0
        %1286 = vmatpush.msra.mxu0 0.0
        %1287 = vmatpush.msra.mxu0 0.0
        %1288 = vmatpush.msra.mxu0 0.0
        %1289 = vmatpush.msra.mxu0 0.0
        %1290 = vmatpush.msra.mxu0 0.0
        %1291 = vmatpush.msra.mxu0 0.0
        %1292 = vmatpush.msra.mxu0 0.0
        %1293 = vmatpush.msra.mxu0 0.0
        %1294 = vmatpush.msra.mxu0 0.0
        %1295 = vmatpush.msra.mxu0 %v1278
        %1296 = vmatmul.f32.gmra.mxu0 %v1276
        %v1297 = vpop.f32.mrf.mxu0
        %v1298 = vadd.f32 0.0, %v1297
        %1299 = vdwg.mxu0
        %1301 = vrot.lane.b32.xlu0 %v1298, 16
        %v1302 = vpop.permute.xlu0 %1301
        %v1304 = vsel %vm815, %v1232, %v1302
        %s1305 = scalar_lea.vmem %s9, 32
        %v1306 = vld [vmem:[%s1305] sm:$0xff]
        %v1307 = vld [vmem:[%s1305 + $0x8] sm:$0xff]
        %v1308 = vld [vmem:[%s1305 + $0x10] sm:$0xff]
        %v1309 = vld [vmem:[%s1305 + $0x18] sm:$0xff]
        %v1311 = vsel %vm787, %v1304, 0
        %1313 = vmatpush.msra.mxu0 0.0
        %1314 = vmatpush.msra.mxu0 0.0
        %1315 = vmatpush.msra.mxu0 0.0
        %1316 = vmatpush.msra.mxu0 0.0
        %1317 = vmatpush.msra.mxu0 0.0
        %1318 = vmatpush.msra.mxu0 0.0
        %1319 = vmatpush.msra.mxu0 0.0
        %1320 = vmatpush.msra.mxu0 0.0
        %1321 = vmatpush.msra.mxu0 0.0
        %1322 = vmatpush.msra.mxu0 0.0
        %1323 = vmatpush.msra.mxu0 0.0
        %1324 = vmatpush.msra.mxu0 0.0
        %1325 = vmatpush.msra.mxu0 %v1309
        %1326 = vmatpush.msra.mxu0 %v1308
        %1327 = vmatpush.msra.mxu0 %v1307
        %1328 = vmatpush.msra.mxu0 %v1306
        %1329 = vmatmul.f32.gmra.mxu0 %v1311
        %v1330 = vpop.f32.mrf.mxu0
        %v1331 = vadd.f32 0.0, %v1330
        %1332 = vdwg.mxu0
        %v1333 = vadd.f32 %v1099, %v1331
        %s1334 = scalar_lea.vmem %s10, 1
        %v1335 = vld [vmem:[%s1334] sm:$0x1]
        %v1337 = vperm.slane %v1335, 0
        %v1339 = vadd.f32 %v1333, %v1337
        %s1340 = scalar_lea.vmem %s11, 1
        %v1341 = vld [vmem:[%s1340] sm:$0x1]
        %s1342 = scalar_lea.vmem %s12, 1
        %v1343 = vld [vmem:[%s1342] sm:$0x1]
        %v1344 = vsel %vm741, %v1339, 0.0
        %1345 = vadd.xlane.f32.xlu0 %v1344
        %v1346 = vpop.xlane.xlu0 %1345
        %v1347 = vmul.f32 %v1346, %v751
        %v1348 = vsub.f32 %v1339, %v1347
        %v1349 = vmul.f32 %v1348, %v1348
        %v1350 = vsel %vm741, %v1349, 0.0
        %1351 = vadd.xlane.f32.xlu0 %v1350
        %v1352 = vpop.xlane.xlu0 %1351
        %v1353 = vmul.f32 %v1352, %v751
        %v1354 = vadd.f32 %v1353, 1e-06
        %v1355 = vrsqrt.pop %v1354
        %v1356 = vmul.f32 %v1355, %v1354
        %v1357 = vmul.f32 %v1356, %v1355
        %v1358 = vmul.f32 0.5, %v1357
        %v1359 = vsub.f32 1.5, %v1358
        %v1360 = vmul.f32 %v1355, %v1359
        %vm1361 = vweird.f32 %v1354
        %vm1362 = vweird.f32 %v1355
        %vm1363 = vmor %vm1361, %vm1362
        %v1364 = vsel %vm1363, %v1355, %v1360
        %v1365 = vmul.f32 %v1348, %v1364
        %v1367 = vperm.slane %v1341, 0
        %v1369 = vmul.f32 %v1365, %v1367
        %v1371 = vperm.slane %v1343, 0
        %v1373 = vadd.f32 %v1369, %v1371
        %s1374 = scalar_lea.vmem %s13, 32
        %v1375 = vld [vmem:[%s1374] sm:$0xff]
        %v1376 = vld [vmem:[%s1374 + $0x8] sm:$0xff]
        %v1377 = vld [vmem:[%s1374 + $0x10] sm:$0xff]
        %v1378 = vld [vmem:[%s1374 + $0x18] sm:$0xff]
        %s1379 = scalar_lea.vmem %s14, 1
        %v1380 = vld [vmem:[%s1379] sm:$0x1]
        %v1382 = vperm.slane %v1380, 0
        %v1385 = vsel %vm787, %v1373, 0
        %1387 = vmatpush.msra.mxu0 0.0
        %1388 = vmatpush.msra.mxu0 0.0
        %1389 = vmatpush.msra.mxu0 0.0
        %1390 = vmatpush.msra.mxu0 0.0
        %1391 = vmatpush.msra.mxu0 0.0
        %1392 = vmatpush.msra.mxu0 0.0
        %1393 = vmatpush.msra.mxu0 0.0
        %1394 = vmatpush.msra.mxu0 0.0
        %1395 = vmatpush.msra.mxu0 0.0
        %1396 = vmatpush.msra.mxu0 0.0
        %1397 = vmatpush.msra.mxu0 0.0
        %1398 = vmatpush.msra.mxu0 0.0
        %1399 = vmatpush.msra.mxu0 %v1378
        %1400 = vmatpush.msra.mxu0 %v1377
        %1401 = vmatpush.msra.mxu0 %v1376
        %1402 = vmatpush.msra.mxu0 %v1375
        %1403 = vmatmul.f32.gmra.mxu0 %v1385
        %v1404 = vpop.f32.mrf.mxu0
        %v1405 = vadd.f32 %v1382, %v1404
        %1406 = vdwg.mxu0
        %v1407 = vmul.f32 %v1405, %v1405
        %v1408 = vmul.f32 %v1405, %v1407
        %v1409 = vmul.f32 %v1408, 0.044715
        %v1410 = vadd.f32 %v1405, %v1409
        %v1411 = vmul.f32 %v1410, 0.7978846
        %v1412 = vtanh.pop %v1411
        %v1413 = vadd.f32 %v1412, 1.0
        %v1414 = vmul.f32 %v1413, 0.5
        %v1415 = vmul.f32 %v1405, %v1414
        %s1416 = scalar_lea.vmem %s15, 128
        %v1417 = vld [vmem:[%s1416] sm:$0xff]
        %v1418 = vld [vmem:[%s1416 + $0x8] sm:$0xff]
        %v1419 = vld [vmem:[%s1416 + $0x10] sm:$0xff]
        %v1420 = vld [vmem:[%s1416 + $0x18] sm:$0xff]
        %v1421 = vld [vmem:[%s1416 + $0x20] sm:$0xff]
        %v1422 = vld [vmem:[%s1416 + $0x28] sm:$0xff]
        %v1423 = vld [vmem:[%s1416 + $0x30] sm:$0xff]
        %v1424 = vld [vmem:[%s1416 + $0x38] sm:$0xff]
        %v1425 = vld [vmem:[%s1416 + $0x40] sm:$0xff]
        %v1426 = vld [vmem:[%s1416 + $0x48] sm:$0xff]
        %v1427 = vld [vmem:[%s1416 + $0x50] sm:$0xff]
        %v1428 = vld [vmem:[%s1416 + $0x58] sm:$0xff]
        %v1429 = vld [vmem:[%s1416 + $0x60] sm:$0xff]
        %v1430 = vld [vmem:[%s1416 + $0x68] sm:$0xff]
        %v1431 = vld [vmem:[%s1416 + $0x70] sm:$0xff]
        %v1432 = vld [vmem:[%s1416 + $0x78] sm:$0xff]
        %1433 = vmatpush.msra.mxu0 %v1432
        %1434 = vmatpush.msra.mxu0 %v1431
        %1435 = vmatpush.msra.mxu0 %v1430
        %1436 = vmatpush.msra.mxu0 %v1429
        %1437 = vmatpush.msra.mxu0 %v1428
        %1438 = vmatpush.msra.mxu0 %v1427
        %1439 = vmatpush.msra.mxu0 %v1426
        %1440 = vmatpush.msra.mxu0 %v1425
        %1441 = vmatpush.msra.mxu0 %v1424
        %1442 = vmatpush.msra.mxu0 %v1423
        %1443 = vmatpush.msra.mxu0 %v1422
        %1444 = vmatpush.msra.mxu0 %v1421
        %1445 = vmatpush.msra.mxu0 %v1420
        %1446 = vmatpush.msra.mxu0 %v1419
        %1447 = vmatpush.msra.mxu0 %v1418
        %1448 = vmatpush.msra.mxu0 %v1417
        %1449 = vmatmul.f32.gmra.mxu0 %v1415
        %v1450 = vpop.f32.mrf.mxu0
        %v1451 = vadd.f32 0.0, %v1450
        %1452 = vdwg.mxu0
        %v1453 = vadd.f32 %v1339, %v1451
        %s1454 = scalar_lea.vmem %s16, 1
        %v1455 = vld [vmem:[%s1454] sm:$0x1]
        %v1457 = vperm.slane %v1455, 0
        %v1459 = vadd.f32 %v1453, %v1457
        %v1460 = vld [vmem:[%s17] sm:$0x1]
        %v1461 = vld [vmem:[%s18] sm:$0x1]
        %vm1462 = vcmask 253952
        %v1463 = vsel %vm1462, %v1459, 0.0
        %1464 = vadd.xlane.f32.xlu0 %v1463
        %v1465 = vpop.xlane.xlu0 %1464
        %v1466 = vmul.f32 %v1465, %v751
        %v1467 = vsub.f32 %v1459, %v1466
        %v1468 = vmul.f32 %v1467, %v1467
        %v1469 = vsel %vm1462, %v1468, 0.0
        %1470 = vadd.xlane.f32.xlu0 %v1469
        %v1471 = vpop.xlane.xlu0 %1470
        %v1472 = vmul.f32 %v1471, %v751
        %v1473 = vadd.f32 %v1472, 1e-06
        %v1474 = vrsqrt.pop %v1473
        %v1475 = vmul.f32 %v1474, %v1473
        %v1476 = vmul.f32 %v1475, %v1474
        %v1477 = vmul.f32 0.5, %v1476
        %v1478 = vsub.f32 1.5, %v1477
        %v1479 = vmul.f32 %v1474, %v1478
        %vm1480 = vweird.f32 %v1473
        %vm1481 = vweird.f32 %v1474
        %vm1482 = vmor %vm1480, %vm1481
        %v1483 = vsel %vm1482, %v1474, %v1479
        %v1484 = vmul.f32 %v1467, %v1483
        %v1485 = vmul.f32 %v1484, %v1460
        %v1486 = vadd.f32 %v1485, %v1461
        %v1487 = vld [vmem:[%s19] sm:$0xff]
        %v1488 = vld [vmem:[%s19 + $0x8] sm:$0xff]
        %v1489 = vld [vmem:[%s19 + $0x10] sm:$0xff]
        %v1490 = vld [vmem:[%s19 + $0x18] sm:$0xff]
        %v1491 = vld [vmem:[%s20] sm:$0x1]
        %v1493 = vsel %vm787, %v1486, 0
        %1495 = vmatpush.msra.mxu0 0.0
        %1496 = vmatpush.msra.mxu0 0.0
        %1497 = vmatpush.msra.mxu0 0.0
        %1498 = vmatpush.msra.mxu0 0.0
        %1499 = vmatpush.msra.mxu0 0.0
        %1500 = vmatpush.msra.mxu0 0.0
        %1501 = vmatpush.msra.mxu0 0.0
        %1502 = vmatpush.msra.mxu0 0.0
        %1503 = vmatpush.msra.mxu0 0.0
        %1504 = vmatpush.msra.mxu0 0.0
        %1505 = vmatpush.msra.mxu0 0.0
        %1506 = vmatpush.msra.mxu0 0.0
        %1507 = vmatpush.msra.mxu0 %v1490
        %1508 = vmatpush.msra.mxu0 %v1489
        %1509 = vmatpush.msra.mxu0 %v1488
        %1510 = vmatpush.msra.mxu0 %v1487
        %1511 = vmatmul.f32.gmra.mxu0 %v1493
        %v1512 = vpop.f32.mrf.mxu0
        %v1513 = vadd.f32 %v1491, %v1512
        %1514 = vdwg.mxu0
        %1515 = vst [vmem:[%s648] sm:$0x1] %v1513
        %s1516 = sand.u32 %s489, 1
        %s1517 = scalar_lea.sflag [#allocation3], %s1516
        %s1518 = sand.u32 %s489, 1
        %s1519 = scalar_lea.vmem [#allocation2], %s1518
        // Predicated region
        $region105: #{lora_vit_forward.1} parent=103 // pred_check
          %p1520 = pneg %p499
        $region106: #{lora_vit_forward.1} parent=103 // pred_check_branch
          %1522 = sbr.rel (%p1520) target = $region108
        $region107: #{lora_vit_forward.1} parent=103 // pred_region
          %1524 = vsyncadd %s1517, 0
          %s1525 = scalar_lea.hbm %s21, %s35
          %s1527 = sshll.u32 %s1519, 4
          %s1528 = int_to_ptr.vmem [resolvable:$true] %s1527
          %s1529 = sshll.u32 %s1525, 4
          %s1530 = int_to_ptr.hbm [resolvable:$true] %s1529
          %1532 = dma.vmem_to_hbm [thread:$0]  %s1528, 16, %s1530, %s1517
        $region108: #{lora_vit_forward.1} parent=103 // pred_fallthru
          _
      $region104: #{lora_vit_forward.1} parent=5 // pred_fallthru
        _
      %p1533 = scmp.le.s32.totalorder 2, %s30
      // Predicated region
      $region109: #{lora_vit_forward.1} parent=5 // pred_check
        %p1534 = pneg %p1533
      $region110: #{lora_vit_forward.1} parent=5 // pred_check_branch
        %1536 = sbr.rel (%p1534) target = $region112
      $region111: #{lora_vit_forward.1} parent=5 // pred_region
        %s1537 = ssub.s32 %s30, 2
        // Predicated region
        $region113: #{lora_vit_forward.1} parent=111 // pred_check
          %p1538 = pneg %p505
        $region114: #{lora_vit_forward.1} parent=111 // pred_check_branch
          %1540 = sbr.rel (%p1538) target = $region116
        $region115: #{lora_vit_forward.1} parent=111 // pred_region
          %s1541 = sand.u32 %s490, 1
          %s1542 = scalar_lea.sflag [#allocation3], %s1541
          %s1543 = sand.u32 %s490, 1
          %s1544 = scalar_lea.vmem [#allocation2], %s1543
          %1546 = dma.done %s1542, 16
        $region116: #{lora_vit_forward.1} parent=111 // pred_fallthru
          _
      $region112: #{lora_vit_forward.1} parent=5 // pred_fallthru
        _
    $region6: #{lora_vit_forward.1} parent=1 // loop_footer
      %s34 = sadd.s32 1, %s30
    $region7: #{lora_vit_forward.1} parent=1 // loop_footer_branch
      %29 = sbr.rel target = $region3
    $region8: #{lora_vit_forward.1} parent=1 // loop_exit
      _
    %1547 = vsyncpa [#allocation3], 1
    %s1548 = scalar_lea.sflag [#allocation3], 1
    %1549 = vsyncpa %s1548, 1

</llo_original>
